<compile_context>
chip_gen: v5e
topology: v5e:2x2
jax: 0.10.0
libtpu: 0.0.40
codegen_flags: <defaults>
</compile_context>

<pallas_src>
import math

import jax
import jax.numpy as jnp
from jax.experimental import pallas as pl
from jax.experimental.pallas import tpu as pltpu

CONTEXT_WINDOW = 16
EMBEDDING_SIZE = 64
NUM_HEADS = 4
HEAD_SIZE = EMBEDDING_SIZE // NUM_HEADS
NUM_ENCODER_BLOCKS = 4
LN_EPS = 1e-5
MATMUL_DTYPE = jnp.bfloat16          # MXU input dtype; accumulation is always f32

# Row indices inside the packed (8, E) per-layer vector parameter.
_BO, _G1, _BE1, _BF1, _BF2, _G2, _BE2 = range(7)


def _layer_norm(x, gamma, beta):
    mu = jnp.mean(x, axis=-1, keepdims=True)
    var = jnp.mean((x - mu) ** 2, axis=-1, keepdims=True)
    return (x - mu) * jax.lax.rsqrt(var + LN_EPS) * gamma + beta


# ----------------------------------------------------------------------------
# Fused encoder-stack Pallas kernel (L encoder blocks in one call)
# ----------------------------------------------------------------------------
def _make_stack_kernel(num_layers):
    def kernel(x_ref, wqkv_ref, wo_ref, w1_ref, w2_ref, vecs_ref, o_ref):
        """One grid step processes a (block_b, T, E) tile of sequences through
        all `num_layers` encoder blocks (weights stay resident in VMEM)."""
        block_b, T, E = x_ref.shape
        h = x_ref[...].astype(jnp.float32).reshape(block_b * T, E)   # rows = tokens

        for l in range(num_layers):                       # static unroll
            bo = vecs_ref[l, _BO:_BO + 1, :]
            g1 = vecs_ref[l, _G1:_G1 + 1, :]
            be1 = vecs_ref[l, _BE1:_BE1 + 1, :]
            bf1 = vecs_ref[l, _BF1:_BF1 + 1, :]
            bf2 = vecs_ref[l, _BF2:_BF2 + 1, :]
            g2 = vecs_ref[l, _G2:_G2 + 1, :]
            be2 = vecs_ref[l, _BE2:_BE2 + 1, :]

            # Fused Q|K|V projection (attention scale folded into Q columns).
            qkv = jnp.dot(h.astype(MATMUL_DTYPE), wqkv_ref[l],
                          preferred_element_type=jnp.float32)        # (Bb*T, 3E)
            q = qkv[:, 0 * E:1 * E].reshape(block_b, T, E)
            k = qkv[:, 1 * E:2 * E].reshape(block_b, T, E)
            v = qkv[:, 2 * E:3 * E].reshape(block_b, T, E)

            # Per-head attention, batched over the sequences in this tile.
            head_outs = []
            for hh in range(NUM_HEADS):
                sl = slice(hh * HEAD_SIZE, (hh + 1) * HEAD_SIZE)
                qh = q[..., sl].astype(MATMUL_DTYPE)
                kh = k[..., sl].astype(MATMUL_DTYPE)
                vh = v[..., sl].astype(MATMUL_DTYPE)
                s = jnp.einsum('bqd,bkd->bqk', qh, kh,
                               preferred_element_type=jnp.float32)   # (Bb, T, T)
                s = s - jnp.max(s, axis=-1, keepdims=True)
                p = jnp.exp(s)
                p = p * pl.reciprocal(jnp.sum(p, axis=-1, keepdims=True),
                                      approx=True)
                head_outs.append(
                    jnp.einsum('bqk,bkd->bqd', p.astype(MATMUL_DTYPE), vh,
                               preferred_element_type=jnp.float32))
            concat = jnp.concatenate(head_outs, axis=-1).reshape(block_b * T, E)

            attn = jnp.dot(concat.astype(MATMUL_DTYPE), wo_ref[l],
                           preferred_element_type=jnp.float32) + bo

            # Residual + LayerNorm 1 (f32).
            h1 = _layer_norm(h + attn, g1, be1)

            # FeedForward: Linear -> (dropout=id) -> ReLU -> (dropout=id) -> Linear.
            ff = jnp.dot(h1.astype(MATMUL_DTYPE), w1_ref[l],
                         preferred_element_type=jnp.float32) + bf1
            ff = jnp.maximum(ff, 0.0)
            ff = jnp.dot(ff.astype(MATMUL_DTYPE), w2_ref[l],
                         preferred_element_type=jnp.float32) + bf2

            # Residual + LayerNorm 2 (f32).
            h = _layer_norm(ff + h1, g2, be2)

        o_ref[...] = h.reshape(block_b, T, E).astype(o_ref.dtype)

    return kernel


def _prepare_stack_params(blocks, matmul_dtype):
    """Per layer: fuse Q|K|V (scale folded into Q), cast matmul weights to the
    MXU dtype, and pack the seven (1, E) vectors into one (8, E) slab."""
    E = EMBEDDING_SIZE
    scale = 1.0 / math.sqrt(HEAD_SIZE)              # 0.25 -> power of two, exact fold
    wqkv, wo, w1, w2, vecs = [], [], [], [], []
    for p in blocks:
        wqkv.append(jnp.concatenate([p["wq"] * scale, p["wk"], p["wv"]], axis=1))
        wo.append(p["wo"])
        w1.append(p["w1"])
        w2.append(p["w2"])
        vecs.append(jnp.concatenate(
            [p["bo"], p["g1"], p["be1"], p["bf1"], p["bf2"], p["g2"], p["be2"],
             jnp.zeros((1, E), jnp.float32)], axis=0))               # (8, E)
    return (jnp.stack(wqkv).astype(matmul_dtype),    # (L, E, 3E)
            jnp.stack(wo).astype(matmul_dtype),      # (L, E, E)
            jnp.stack(w1).astype(matmul_dtype),      # (L, E, E)
            jnp.stack(w2).astype(matmul_dtype),      # (L, E, E)
            jnp.stack(vecs).astype(jnp.float32))     # (L, 8, E)


def _pick_block_b(batch, max_block=256):
    """Largest divisor of `batch` <= max_block, keeping >= 2 grid steps when
    possible (v7x has two TensorCores per chip).  At T=16, E=64 even a
    256-sequence tile is ~1 MiB of activations, far under v7x's 64 MiB VMEM."""
    if batch <= 1:
        return max(batch, 1)
    target = max(1, min(max_block, batch // 2))
    for bb in range(target, 0, -1):
        if batch % bb == 0:
            return bb
    return 1


def encoder_stack(x, blocks, *, block_b=None, matmul_dtype=MATMUL_DTYPE):
    """Run `len(blocks)` encoder blocks over x in a single pallas_call."""
    B, T, E = x.shape
    assert E == EMBEDDING_SIZE
    L = len(blocks)
    if block_b is None:
        block_b = _pick_block_b(B)
    assert B % block_b == 0
    grid = (B // block_b,)

    wqkv, wo, w1, w2, vecs = _prepare_stack_params(blocks, matmul_dtype)
    itemsize = jnp.dtype(matmul_dtype).itemsize

    full = lambda shape: pl.BlockSpec(shape, lambda b: (0,) * len(shape))

    flops_per_tok = (2 * E * 3 * E        # fused QKV projection
                     + 2 * 2 * T * E      # scores + attn@V (all heads)
                     + 2 * E * E          # output projection
                     + 2 * 2 * E * E)     # feed-forward
    flops = L * B * T * flops_per_tok
    transcendentals = L * B * T * (NUM_HEADS * T + 8)    # exp + rsqrt / reciprocal
    bytes_accessed = (2 * B * T * E * 4                  # activations in + out (f32)
                      + L * 6 * E * E * itemsize         # wqkv + wo + w1 + w2
                      + L * 8 * E * 4)                    # packed vectors

    return pl.pallas_call(
        _make_stack_kernel(L),
        out_shape=jax.ShapeDtypeStruct((B, T, E), x.dtype),
        grid_spec=pltpu.PrefetchScalarGridSpec(
            num_scalar_prefetch=0,
            grid=grid,
            in_specs=[
                pl.BlockSpec((block_b, T, E), lambda b: (b, 0, 0)),  # x
                full((L, E, 3 * E)),                                 # fused Wq|Wk|Wv
                full((L, E, E)),                                     # Wo
                full((L, E, E)),                                     # FF W1
                full((L, E, E)),                                     # FF W2
                full((L, 8, E)),                                     # packed vectors
            ],
            out_specs=pl.BlockSpec((block_b, T, E), lambda b: (b, 0, 0)),
        ),
        compiler_params=pltpu.CompilerParams(
            dimension_semantics=("parallel",)),
        cost_estimate=pl.CostEstimate(
            flops=flops,
            transcendentals=transcendentals,
            bytes_accessed=bytes_accessed),
    )(x, wqkv, wo, w1, w2, vecs)


def encoder_block(x, params, **kw):
    """Single EncoderBlock (same kernel, 1-layer stack)."""
    return encoder_stack(x, [params], **kw)


# ----------------------------------------------------------------------------
# Pure-JAX references (mirror the PyTorch forward, eval mode, at the same
# bf16-matmul / f32-accumulate precision as the kernel)
# ----------------------------------------------------------------------------
def encoder_block_ref(x, p, matmul_dtype=MATMUL_DTYPE):
    def mm(a, b):
        return jnp.matmul(a.astype(matmul_dtype), b.astype(matmul_dtype),
                          preferred_element_type=jnp.float32)

    xf = x.astype(jnp.float32)
    q, k, v = mm(xf, p["wq"]), mm(xf, p["wk"]), mm(xf, p["wv"])
    outs = []
    for h in range(NUM_HEADS):
        sl = slice(h * HEAD_SIZE, (h + 1) * HEAD_SIZE)
        s = mm(q[..., sl], jnp.swapaxes(k[..., sl], -2, -1)) / math.sqrt(HEAD_SIZE)
        pmat = jax.nn.softmax(s, axis=-1)
        outs.append(mm(pmat, v[..., sl]))
    attn = mm(jnp.concatenate(outs, axis=-1), p["wo"]) + p["bo"]
    h1 = _layer_norm(xf + attn, p["g1"], p["be1"])
    ff = mm(jnp.maximum(mm(h1, p["w1"]) + p["bf1"], 0.0), p["w2"]) + p["bf2"]
    return _layer_norm(ff + h1, p["g2"], p["be2"])


# ----------------------------------------------------------------------------
# Full BERT forward
# ----------------------------------------------------------------------------
def bert_forward(token_ids, params):
    """Embeddings -> fused encoder stack (Pallas) -> vocab logits."""
    # TODO(synk): embedding gather and the final vocab projection stay in plain
    # JAX (no clean BlockSpec form for the gather at this scope).
    B, T = token_ids.shape
    h = jnp.take(params["tok_emb"], token_ids, axis=0) + params["pos_emb"][None, :T, :]
    h = encoder_stack(h, params["blocks"])
    return h @ params["w_cls"] + params["b_cls"]


def bert_forward_ref(token_ids, params, matmul_dtype=MATMUL_DTYPE):
    B, T = token_ids.shape
    h = jnp.take(params["tok_emb"], token_ids, axis=0) + params["pos_emb"][None, :T, :]
    for blk in params["blocks"]:
        h = encoder_block_ref(h, blk, matmul_dtype)
    return h @ params["w_cls"] + params["b_cls"]


# ----------------------------------------------------------------------------
# Parameter construction
# ----------------------------------------------------------------------------
def make_encoder_block_params(key):
    E = EMBEDDING_SIZE
    ks = jax.random.split(key, 8)
    scl = 0.08
    return {
        "wq": scl * jax.random.normal(ks[0], (E, E), jnp.float32),
        "wk": scl * jax.random.normal(ks[1], (E, E), jnp.float32),
        "wv": scl * jax.random.normal(ks[2], (E, E), jnp.float32),
        "wo": scl * jax.random.normal(ks[3], (E, E), jnp.float32),
        "bo": scl * jax.random.normal(ks[4], (1, E), jnp.float32),
        "g1": jnp.ones((1, E), jnp.float32),
        "be1": jnp.zeros((1, E), jnp.float32),
        "w1": scl * jax.random.normal(ks[5], (E, E), jnp.float32),
        "bf1": scl * jax.random.normal(ks[6], (1, E), jnp.float32),
        "w2": scl * jax.random.normal(ks[7], (E, E), jnp.float32),
        "bf2": jnp.zeros((1, E), jnp.float32),
        "g2": jnp.ones((1, E), jnp.float32),
        "be2": jnp.zeros((1, E), jnp.float32),
    }


def make_bert_params(key, vocab_size):
    ks = jax.random.split(key, NUM_ENCODER_BLOCKS + 3)
    return {
        "tok_emb": 0.1 * jax.random.normal(ks[0], (vocab_size, EMBEDDING_SIZE), jnp.float32),
        "pos_emb": 0.1 * jax.random.normal(ks[1], (CONTEXT_WINDOW, EMBEDDING_SIZE), jnp.float32),
        "blocks": [make_encoder_block_params(ks[2 + i]) for i in range(NUM_ENCODER_BLOCKS)],
        "w_cls": 0.08 * jax.random.normal(ks[-1], (EMBEDDING_SIZE, vocab_size), jnp.float32),
        "b_cls": jnp.zeros((vocab_size,), jnp.float32),
    }


if __name__ == "__main__":
    key = jax.random.PRNGKey(0)
    k_x, k_blk, k_ids, k_bert = jax.random.split(key, 4)

    B, T, E = 8, CONTEXT_WINDOW, EMBEDDING_SIZE

    # --- Standalone EncoderBlock kernel check --------------------------------
    x = jax.random.normal(k_x, (B, T, E), jnp.float32)
    blk_params = make_encoder_block_params(k_blk)
    out = jax.block_until_ready(encoder_block(x, blk_params))
    ref = encoder_block_ref(x, blk_params)
    assert out.shape == (B, T, E)
    err_blk = float(jnp.max(jnp.abs(out - ref)))
    assert jnp.allclose(out, ref, atol=2e-2, rtol=2e-2), (
        f"encoder block mismatch vs reference, max |err| = {err_blk}")

    # --- Full BERT forward (embeddings -> 4 fused blocks -> vocab logits) ----
    VOCAB = 32
    bert_params = make_bert_params(k_bert, VOCAB)
    token_ids = jax.random.randint(k_ids, (B, T), 0, VOCAB)
    logits = jax.block_until_ready(bert_forward(token_ids, bert_params))
    logits_ref = bert_forward_ref(token_ids, bert_params)
    assert logits.shape == (B, T, VOCAB)
    err_bert = float(jnp.max(jnp.abs(logits - logits_ref)))
    assert jnp.allclose(logits, logits_ref, atol=5e-2, rtol=5e-2), (
        f"BERT mismatch vs reference, max |err| = {err_bert}")

    print("KERNEL_OK")
</pallas_src>

<mosaic_0001>
module attributes {stable_mosaic.version = 11 : i64} {
  func.func @kernel(%arg0: i32, %arg1: memref<4x16x64xf32, #tpu.memory_space<vmem>>, %arg2: memref<1x64x192xbf16, #tpu.memory_space<vmem>>, %arg3: memref<1x64x64xbf16, #tpu.memory_space<vmem>>, %arg4: memref<1x64x64xbf16, #tpu.memory_space<vmem>>, %arg5: memref<1x64x64xbf16, #tpu.memory_space<vmem>>, %arg6: memref<1x8x64xf32, #tpu.memory_space<vmem>>, %arg7: memref<4x16x64xf32, #tpu.memory_space<vmem>>) attributes {dimension_semantics = [#tpu.dimension_semantics<parallel>], iteration_bounds = array<i64: 2>, scalar_prefetch = 0 : i64, scratch_operands = 0 : i64, tpu.core_type = #tpu.core_type<tc>, window_params = [{transform_indices = @transform_0, window_bounds = array<i64: 4, 16, 64>}, {pipeline_mode = #tpu.pipeline_mode<synchronous>, transform_indices = @transform_1, window_bounds = array<i64: 1, 64, 192>}, {pipeline_mode = #tpu.pipeline_mode<synchronous>, transform_indices = @transform_2, window_bounds = array<i64: 1, 64, 64>}, {pipeline_mode = #tpu.pipeline_mode<synchronous>, transform_indices = @transform_3, window_bounds = array<i64: 1, 64, 64>}, {pipeline_mode = #tpu.pipeline_mode<synchronous>, transform_indices = @transform_4, window_bounds = array<i64: 1, 64, 64>}, {pipeline_mode = #tpu.pipeline_mode<synchronous>, transform_indices = @transform_5, window_bounds = array<i64: 1, 8, 64>}, {transform_indices = @transform_6, window_bounds = array<i64: 4, 16, 64>}]} {
    %c0 = arith.constant 0 : index
    %c0_0 = arith.constant 0 : index
    %c0_1 = arith.constant 0 : index
    %0 = vector.load %arg1[%c0, %c0_0, %c0_1] : memref<4x16x64xf32, #tpu.memory_space<vmem>>, vector<4x16x64xf32>
    %1 = vector.shape_cast %0 : vector<4x16x64xf32> to vector<64x64xf32>
    %c0_2 = arith.constant 0 : index
    %c0_3 = arith.constant 0 : index
    %c0_4 = arith.constant 0 : index
    %2 = vector.load %arg6[%c0_2, %c0_3, %c0_4] : memref<1x8x64xf32, #tpu.memory_space<vmem>>, vector<1x1x64xf32>
    %3 = vector.shape_cast %2 : vector<1x1x64xf32> to vector<1x64xf32>
    %c0_5 = arith.constant 0 : index
    %c1 = arith.constant 1 : index
    %c0_6 = arith.constant 0 : index
    %4 = vector.load %arg6[%c0_5, %c1, %c0_6] : memref<1x8x64xf32, #tpu.memory_space<vmem>>, vector<1x1x64xf32>
    %5 = vector.shape_cast %4 : vector<1x1x64xf32> to vector<1x64xf32>
    %c0_7 = arith.constant 0 : index
    %c2 = arith.constant 2 : index
    %c0_8 = arith.constant 0 : index
    %6 = vector.load %arg6[%c0_7, %c2, %c0_8] : memref<1x8x64xf32, #tpu.memory_space<vmem>>, vector<1x1x64xf32>
    %7 = vector.shape_cast %6 : vector<1x1x64xf32> to vector<1x64xf32>
    %c0_9 = arith.constant 0 : index
    %c3 = arith.constant 3 : index
    %c0_10 = arith.constant 0 : index
    %8 = vector.load %arg6[%c0_9, %c3, %c0_10] : memref<1x8x64xf32, #tpu.memory_space<vmem>>, vector<1x1x64xf32>
    %9 = vector.shape_cast %8 : vector<1x1x64xf32> to vector<1x64xf32>
    %c0_11 = arith.constant 0 : index
    %c4 = arith.constant 4 : index
    %c0_12 = arith.constant 0 : index
    %10 = vector.load %arg6[%c0_11, %c4, %c0_12] : memref<1x8x64xf32, #tpu.memory_space<vmem>>, vector<1x1x64xf32>
    %11 = vector.shape_cast %10 : vector<1x1x64xf32> to vector<1x64xf32>
    %c0_13 = arith.constant 0 : index
    %c5 = arith.constant 5 : index
    %c0_14 = arith.constant 0 : index
    %12 = vector.load %arg6[%c0_13, %c5, %c0_14] : memref<1x8x64xf32, #tpu.memory_space<vmem>>, vector<1x1x64xf32>
    %13 = vector.shape_cast %12 : vector<1x1x64xf32> to vector<1x64xf32>
    %c0_15 = arith.constant 0 : index
    %c6 = arith.constant 6 : index
    %c0_16 = arith.constant 0 : index
    %14 = vector.load %arg6[%c0_15, %c6, %c0_16] : memref<1x8x64xf32, #tpu.memory_space<vmem>>, vector<1x1x64xf32>
    %15 = vector.shape_cast %14 : vector<1x1x64xf32> to vector<1x64xf32>
    %16 = arith.truncf %1 : vector<64x64xf32> to vector<64x64xbf16>
    %c0_17 = arith.constant 0 : index
    %c0_18 = arith.constant 0 : index
    %c0_19 = arith.constant 0 : index
    %17 = vector.load %arg2[%c0_17, %c0_18, %c0_19] : memref<1x64x192xbf16, #tpu.memory_space<vmem>>, vector<1x64x192xbf16>
    %18 = vector.shape_cast %17 : vector<1x64x192xbf16> to vector<64x192xbf16>
    %cst = arith.constant dense<0.000000e+00> : vector<64x192xf32>
    %19 = tpu.matmul %16, %18, %cst {dimension_numbers = #tpu.dot_dimension_numbers<[1], [0], [0], [1], [0, 0, 1, 1], [], []>} : vector<64x64xbf16>, vector<64x192xbf16>, vector<64x192xf32> -> vector<64x192xf32>
    %20 = vector.extract_strided_slice %19 {offsets = [0, 0], sizes = [64, 64], strides = [1, 1]} : vector<64x192xf32> to vector<64x64xf32>
    %21 = vector.shape_cast %20 : vector<64x64xf32> to vector<4x16x64xf32>
    %22 = vector.extract_strided_slice %19 {offsets = [0, 64], sizes = [64, 64], strides = [1, 1]} : vector<64x192xf32> to vector<64x64xf32>
    %23 = vector.shape_cast %22 : vector<64x64xf32> to vector<4x16x64xf32>
    %24 = vector.extract_strided_slice %19 {offsets = [0, 128], sizes = [64, 64], strides = [1, 1]} : vector<64x192xf32> to vector<64x64xf32>
    %25 = vector.shape_cast %24 : vector<64x64xf32> to vector<4x16x64xf32>
    %26 = vector.extract_strided_slice %21 {offsets = [0, 0, 0], sizes = [4, 16, 16], strides = [1, 1, 1]} : vector<4x16x64xf32> to vector<4x16x16xf32>
    %27 = arith.truncf %26 : vector<4x16x16xf32> to vector<4x16x16xbf16>
    %28 = vector.extract_strided_slice %23 {offsets = [0, 0, 0], sizes = [4, 16, 16], strides = [1, 1, 1]} : vector<4x16x64xf32> to vector<4x16x16xf32>
    %29 = arith.truncf %28 : vector<4x16x16xf32> to vector<4x16x16xbf16>
    %30 = vector.extract_strided_slice %25 {offsets = [0, 0, 0], sizes = [4, 16, 16], strides = [1, 1, 1]} : vector<4x16x64xf32> to vector<4x16x16xf32>
    %31 = arith.truncf %30 : vector<4x16x16xf32> to vector<4x16x16xbf16>
    "tpu.trace_start"() <{level = 10 : i32, message = "bqd,bkd->bqk"}> : () -> ()
    %cst_20 = arith.constant dense<0.000000e+00> : vector<4x16x16xf32>
    %32 = tpu.matmul %27, %29, %cst_20 {dimension_numbers = #tpu.dot_dimension_numbers<[2], [2], [1], [1], [0, 0, 0, 1, 1, 1], [0], [0]>} : vector<4x16x16xbf16>, vector<4x16x16xbf16>, vector<4x16x16xf32> -> vector<4x16x16xf32>
    "tpu.trace_stop"() : () -> ()
    %cst_21 = arith.constant dense<0xFF800000> : vector<4x16xf32>
    %33 = vector.multi_reduction <maximumf>, %32, %cst_21 [2] : vector<4x16x16xf32> to vector<4x16xf32>
    %34 = vector.shape_cast %33 : vector<4x16xf32> to vector<4x16x1xf32>
    %35 = vector.broadcast %34 : vector<4x16x1xf32> to vector<4x16x16xf32>
    %36 = arith.subf %32, %35 : vector<4x16x16xf32>
    %37 = math.exp %36 : vector<4x16x16xf32>
    %cst_22 = arith.constant dense<0.000000e+00> : vector<4x16xf32>
    %38 = vector.multi_reduction <add>, %37, %cst_22 [2] : vector<4x16x16xf32> to vector<4x16xf32>
    %39 = vector.shape_cast %38 : vector<4x16xf32> to vector<4x16x1xf32>
    %40 = tpu.reciprocal %39 {approx = true} : vector<4x16x1xf32> -> vector<4x16x1xf32>
    %41 = vector.broadcast %40 : vector<4x16x1xf32> to vector<4x16x16xf32>
    %42 = arith.mulf %37, %41 : vector<4x16x16xf32>
    %43 = arith.truncf %42 : vector<4x16x16xf32> to vector<4x16x16xbf16>
    "tpu.trace_start"() <{level = 10 : i32, message = "bqk,bkd->bqd"}> : () -> ()
    %cst_23 = arith.constant dense<0.000000e+00> : vector<4x16x16xf32>
    %44 = tpu.matmul %43, %31, %cst_23 {dimension_numbers = #tpu.dot_dimension_numbers<[2], [1], [1], [2], [0, 0, 0, 1, 1, 2], [0], [0]>} : vector<4x16x16xbf16>, vector<4x16x16xbf16>, vector<4x16x16xf32> -> vector<4x16x16xf32>
    "tpu.trace_stop"() : () -> ()
    %45 = vector.extract_strided_slice %21 {offsets = [0, 0, 16], sizes = [4, 16, 16], strides = [1, 1, 1]} : vector<4x16x64xf32> to vector<4x16x16xf32>
    %46 = arith.truncf %45 : vector<4x16x16xf32> to vector<4x16x16xbf16>
    %47 = vector.extract_strided_slice %23 {offsets = [0, 0, 16], sizes = [4, 16, 16], strides = [1, 1, 1]} : vector<4x16x64xf32> to vector<4x16x16xf32>
    %48 = arith.truncf %47 : vector<4x16x16xf32> to vector<4x16x16xbf16>
    %49 = vector.extract_strided_slice %25 {offsets = [0, 0, 16], sizes = [4, 16, 16], strides = [1, 1, 1]} : vector<4x16x64xf32> to vector<4x16x16xf32>
    %50 = arith.truncf %49 : vector<4x16x16xf32> to vector<4x16x16xbf16>
    "tpu.trace_start"() <{level = 10 : i32, message = "bqd,bkd->bqk"}> : () -> ()
    %cst_24 = arith.constant dense<0.000000e+00> : vector<4x16x16xf32>
    %51 = tpu.matmul %46, %48, %cst_24 {dimension_numbers = #tpu.dot_dimension_numbers<[2], [2], [1], [1], [0, 0, 0, 1, 1, 1], [0], [0]>} : vector<4x16x16xbf16>, vector<4x16x16xbf16>, vector<4x16x16xf32> -> vector<4x16x16xf32>
    "tpu.trace_stop"() : () -> ()
    %cst_25 = arith.constant dense<0xFF800000> : vector<4x16xf32>
    %52 = vector.multi_reduction <maximumf>, %51, %cst_25 [2] : vector<4x16x16xf32> to vector<4x16xf32>
    %53 = vector.shape_cast %52 : vector<4x16xf32> to vector<4x16x1xf32>
    %54 = vector.broadcast %53 : vector<4x16x1xf32> to vector<4x16x16xf32>
    %55 = arith.subf %51, %54 : vector<4x16x16xf32>
    %56 = math.exp %55 : vector<4x16x16xf32>
    %cst_26 = arith.constant dense<0.000000e+00> : vector<4x16xf32>
    %57 = vector.multi_reduction <add>, %56, %cst_26 [2] : vector<4x16x16xf32> to vector<4x16xf32>
    %58 = vector.shape_cast %57 : vector<4x16xf32> to vector<4x16x1xf32>
    %59 = tpu.reciprocal %58 {approx = true} : vector<4x16x1xf32> -> vector<4x16x1xf32>
    %60 = vector.broadcast %59 : vector<4x16x1xf32> to vector<4x16x16xf32>
    %61 = arith.mulf %56, %60 : vector<4x16x16xf32>
    %62 = arith.truncf %61 : vector<4x16x16xf32> to vector<4x16x16xbf16>
    "tpu.trace_start"() <{level = 10 : i32, message = "bqk,bkd->bqd"}> : () -> ()
    %cst_27 = arith.constant dense<0.000000e+00> : vector<4x16x16xf32>
    %63 = tpu.matmul %62, %50, %cst_27 {dimension_numbers = #tpu.dot_dimension_numbers<[2], [1], [1], [2], [0, 0, 0, 1, 1, 2], [0], [0]>} : vector<4x16x16xbf16>, vector<4x16x16xbf16>, vector<4x16x16xf32> -> vector<4x16x16xf32>
    "tpu.trace_stop"() : () -> ()
    %64 = vector.extract_strided_slice %21 {offsets = [0, 0, 32], sizes = [4, 16, 16], strides = [1, 1, 1]} : vector<4x16x64xf32> to vector<4x16x16xf32>
    %65 = arith.truncf %64 : vector<4x16x16xf32> to vector<4x16x16xbf16>
    %66 = vector.extract_strided_slice %23 {offsets = [0, 0, 32], sizes = [4, 16, 16], strides = [1, 1, 1]} : vector<4x16x64xf32> to vector<4x16x16xf32>
    %67 = arith.truncf %66 : vector<4x16x16xf32> to vector<4x16x16xbf16>
    %68 = vector.extract_strided_slice %25 {offsets = [0, 0, 32], sizes = [4, 16, 16], strides = [1, 1, 1]} : vector<4x16x64xf32> to vector<4x16x16xf32>
    %69 = arith.truncf %68 : vector<4x16x16xf32> to vector<4x16x16xbf16>
    "tpu.trace_start"() <{level = 10 : i32, message = "bqd,bkd->bqk"}> : () -> ()
    %cst_28 = arith.constant dense<0.000000e+00> : vector<4x16x16xf32>
    %70 = tpu.matmul %65, %67, %cst_28 {dimension_numbers = #tpu.dot_dimension_numbers<[2], [2], [1], [1], [0, 0, 0, 1, 1, 1], [0], [0]>} : vector<4x16x16xbf16>, vector<4x16x16xbf16>, vector<4x16x16xf32> -> vector<4x16x16xf32>
    "tpu.trace_stop"() : () -> ()
    %cst_29 = arith.constant dense<0xFF800000> : vector<4x16xf32>
    %71 = vector.multi_reduction <maximumf>, %70, %cst_29 [2] : vector<4x16x16xf32> to vector<4x16xf32>
    %72 = vector.shape_cast %71 : vector<4x16xf32> to vector<4x16x1xf32>
    %73 = vector.broadcast %72 : vector<4x16x1xf32> to vector<4x16x16xf32>
    %74 = arith.subf %70, %73 : vector<4x16x16xf32>
    %75 = math.exp %74 : vector<4x16x16xf32>
    %cst_30 = arith.constant dense<0.000000e+00> : vector<4x16xf32>
    %76 = vector.multi_reduction <add>, %75, %cst_30 [2] : vector<4x16x16xf32> to vector<4x16xf32>
    %77 = vector.shape_cast %76 : vector<4x16xf32> to vector<4x16x1xf32>
    %78 = tpu.reciprocal %77 {approx = true} : vector<4x16x1xf32> -> vector<4x16x1xf32>
    %79 = vector.broadcast %78 : vector<4x16x1xf32> to vector<4x16x16xf32>
    %80 = arith.mulf %75, %79 : vector<4x16x16xf32>
    %81 = arith.truncf %80 : vector<4x16x16xf32> to vector<4x16x16xbf16>
    "tpu.trace_start"() <{level = 10 : i32, message = "bqk,bkd->bqd"}> : () -> ()
    %cst_31 = arith.constant dense<0.000000e+00> : vector<4x16x16xf32>
    %82 = tpu.matmul %81, %69, %cst_31 {dimension_numbers = #tpu.dot_dimension_numbers<[2], [1], [1], [2], [0, 0, 0, 1, 1, 2], [0], [0]>} : vector<4x16x16xbf16>, vector<4x16x16xbf16>, vector<4x16x16xf32> -> vector<4x16x16xf32>
    "tpu.trace_stop"() : () -> ()
    %83 = vector.extract_strided_slice %21 {offsets = [0, 0, 48], sizes = [4, 16, 16], strides = [1, 1, 1]} : vector<4x16x64xf32> to vector<4x16x16xf32>
    %84 = arith.truncf %83 : vector<4x16x16xf32> to vector<4x16x16xbf16>
    %85 = vector.extract_strided_slice %23 {offsets = [0, 0, 48], sizes = [4, 16, 16], strides = [1, 1, 1]} : vector<4x16x64xf32> to vector<4x16x16xf32>
    %86 = arith.truncf %85 : vector<4x16x16xf32> to vector<4x16x16xbf16>
    %87 = vector.extract_strided_slice %25 {offsets = [0, 0, 48], sizes = [4, 16, 16], strides = [1, 1, 1]} : vector<4x16x64xf32> to vector<4x16x16xf32>
    %88 = arith.truncf %87 : vector<4x16x16xf32> to vector<4x16x16xbf16>
    "tpu.trace_start"() <{level = 10 : i32, message = "bqd,bkd->bqk"}> : () -> ()
    %cst_32 = arith.constant dense<0.000000e+00> : vector<4x16x16xf32>
    %89 = tpu.matmul %84, %86, %cst_32 {dimension_numbers = #tpu.dot_dimension_numbers<[2], [2], [1], [1], [0, 0, 0, 1, 1, 1], [0], [0]>} : vector<4x16x16xbf16>, vector<4x16x16xbf16>, vector<4x16x16xf32> -> vector<4x16x16xf32>
    "tpu.trace_stop"() : () -> ()
    %cst_33 = arith.constant dense<0xFF800000> : vector<4x16xf32>
    %90 = vector.multi_reduction <maximumf>, %89, %cst_33 [2] : vector<4x16x16xf32> to vector<4x16xf32>
    %91 = vector.shape_cast %90 : vector<4x16xf32> to vector<4x16x1xf32>
    %92 = vector.broadcast %91 : vector<4x16x1xf32> to vector<4x16x16xf32>
    %93 = arith.subf %89, %92 : vector<4x16x16xf32>
    %94 = math.exp %93 : vector<4x16x16xf32>
    %cst_34 = arith.constant dense<0.000000e+00> : vector<4x16xf32>
    %95 = vector.multi_reduction <add>, %94, %cst_34 [2] : vector<4x16x16xf32> to vector<4x16xf32>
    %96 = vector.shape_cast %95 : vector<4x16xf32> to vector<4x16x1xf32>
    %97 = tpu.reciprocal %96 {approx = true} : vector<4x16x1xf32> -> vector<4x16x1xf32>
    %98 = vector.broadcast %97 : vector<4x16x1xf32> to vector<4x16x16xf32>
    %99 = arith.mulf %94, %98 : vector<4x16x16xf32>
    %100 = arith.truncf %99 : vector<4x16x16xf32> to vector<4x16x16xbf16>
    "tpu.trace_start"() <{level = 10 : i32, message = "bqk,bkd->bqd"}> : () -> ()
    %cst_35 = arith.constant dense<0.000000e+00> : vector<4x16x16xf32>
    %101 = tpu.matmul %100, %88, %cst_35 {dimension_numbers = #tpu.dot_dimension_numbers<[2], [1], [1], [2], [0, 0, 0, 1, 1, 2], [0], [0]>} : vector<4x16x16xbf16>, vector<4x16x16xbf16>, vector<4x16x16xf32> -> vector<4x16x16xf32>
    "tpu.trace_stop"() : () -> ()
    %102 = tpu.concatenate %44, %63, %82, %101 in 2 : vector<4x16x16xf32>, vector<4x16x16xf32>, vector<4x16x16xf32>, vector<4x16x16xf32> -> vector<4x16x64xf32>
    %103 = vector.shape_cast %102 : vector<4x16x64xf32> to vector<64x64xf32>
    %104 = arith.truncf %103 : vector<64x64xf32> to vector<64x64xbf16>
    %c0_36 = arith.constant 0 : index
    %c0_37 = arith.constant 0 : index
    %c0_38 = arith.constant 0 : index
    %105 = vector.load %arg3[%c0_36, %c0_37, %c0_38] : memref<1x64x64xbf16, #tpu.memory_space<vmem>>, vector<1x64x64xbf16>
    %106 = vector.shape_cast %105 : vector<1x64x64xbf16> to vector<64x64xbf16>
    %cst_39 = arith.constant dense<0.000000e+00> : vector<64x64xf32>
    %107 = tpu.matmul %104, %106, %cst_39 {dimension_numbers = #tpu.dot_dimension_numbers<[1], [0], [0], [1], [0, 0, 1, 1], [], []>} : vector<64x64xbf16>, vector<64x64xbf16>, vector<64x64xf32> -> vector<64x64xf32>
    %108 = vector.broadcast %3 : vector<1x64xf32> to vector<64x64xf32>
    %109 = arith.addf %107, %108 : vector<64x64xf32>
    %110 = arith.addf %1, %109 : vector<64x64xf32>
    %cst_40 = arith.constant dense<0.000000e+00> : vector<64xf32>
    %111 = vector.multi_reduction <add>, %110, %cst_40 [1] : vector<64x64xf32> to vector<64xf32>
    %112 = vector.shape_cast %111 : vector<64xf32> to vector<64x1xf32>
    %cst_41 = arith.constant 6.400000e+01 : f32
    %113 = vector.broadcast %cst_41 : f32 to vector<64x1xf32>
    %114 = arith.divf %112, %113 : vector<64x1xf32>
    %115 = vector.broadcast %114 : vector<64x1xf32> to vector<64x64xf32>
    %116 = arith.subf %110, %115 : vector<64x64xf32>
    %117 = arith.mulf %116, %116 : vector<64x64xf32>
    %cst_42 = arith.constant dense<0.000000e+00> : vector<64xf32>
    %118 = vector.multi_reduction <add>, %117, %cst_42 [1] : vector<64x64xf32> to vector<64xf32>
    %119 = vector.shape_cast %118 : vector<64xf32> to vector<64x1xf32>
    %cst_43 = arith.constant 6.400000e+01 : f32
    %120 = vector.broadcast %cst_43 : f32 to vector<64x1xf32>
    %121 = arith.divf %119, %120 : vector<64x1xf32>
    %122 = vector.broadcast %114 : vector<64x1xf32> to vector<64x64xf32>
    %123 = arith.subf %110, %122 : vector<64x64xf32>
    %cst_44 = arith.constant 9.99999974E-6 : f32
    %124 = vector.broadcast %cst_44 : f32 to vector<64x1xf32>
    %125 = arith.addf %121, %124 : vector<64x1xf32>
    %126 = math.rsqrt %125 : vector<64x1xf32>
    %127 = vector.broadcast %126 : vector<64x1xf32> to vector<64x64xf32>
    %128 = arith.mulf %123, %127 : vector<64x64xf32>
    %129 = vector.broadcast %5 : vector<1x64xf32> to vector<64x64xf32>
    %130 = arith.mulf %128, %129 : vector<64x64xf32>
    %131 = vector.broadcast %7 : vector<1x64xf32> to vector<64x64xf32>
    %132 = arith.addf %130, %131 : vector<64x64xf32>
    %133 = arith.truncf %132 : vector<64x64xf32> to vector<64x64xbf16>
    %c0_45 = arith.constant 0 : index
    %c0_46 = arith.constant 0 : index
    %c0_47 = arith.constant 0 : index
    %134 = vector.load %arg4[%c0_45, %c0_46, %c0_47] : memref<1x64x64xbf16, #tpu.memory_space<vmem>>, vector<1x64x64xbf16>
    %135 = vector.shape_cast %134 : vector<1x64x64xbf16> to vector<64x64xbf16>
    %cst_48 = arith.constant dense<0.000000e+00> : vector<64x64xf32>
    %136 = tpu.matmul %133, %135, %cst_48 {dimension_numbers = #tpu.dot_dimension_numbers<[1], [0], [0], [1], [0, 0, 1, 1], [], []>} : vector<64x64xbf16>, vector<64x64xbf16>, vector<64x64xf32> -> vector<64x64xf32>
    %137 = vector.broadcast %9 : vector<1x64xf32> to vector<64x64xf32>
    %138 = arith.addf %136, %137 : vector<64x64xf32>
    %cst_49 = arith.constant 0.000000e+00 : f32
    %139 = vector.broadcast %cst_49 : f32 to vector<64x64xf32>
    %140 = arith.maximumf %138, %139 : vector<64x64xf32>
    %141 = arith.truncf %140 : vector<64x64xf32> to vector<64x64xbf16>
    %c0_50 = arith.constant 0 : index
    %c0_51 = arith.constant 0 : index
    %c0_52 = arith.constant 0 : index
    %142 = vector.load %arg5[%c0_50, %c0_51, %c0_52] : memref<1x64x64xbf16, #tpu.memory_space<vmem>>, vector<1x64x64xbf16>
    %143 = vector.shape_cast %142 : vector<1x64x64xbf16> to vector<64x64xbf16>
    %cst_53 = arith.constant dense<0.000000e+00> : vector<64x64xf32>
    %144 = tpu.matmul %141, %143, %cst_53 {dimension_numbers = #tpu.dot_dimension_numbers<[1], [0], [0], [1], [0, 0, 1, 1], [], []>} : vector<64x64xbf16>, vector<64x64xbf16>, vector<64x64xf32> -> vector<64x64xf32>
    %145 = vector.broadcast %11 : vector<1x64xf32> to vector<64x64xf32>
    %146 = arith.addf %144, %145 : vector<64x64xf32>
    %147 = arith.addf %146, %132 : vector<64x64xf32>
    %cst_54 = arith.constant dense<0.000000e+00> : vector<64xf32>
    %148 = vector.multi_reduction <add>, %147, %cst_54 [1] : vector<64x64xf32> to vector<64xf32>
    %149 = vector.shape_cast %148 : vector<64xf32> to vector<64x1xf32>
    %cst_55 = arith.constant 6.400000e+01 : f32
    %150 = vector.broadcast %cst_55 : f32 to vector<64x1xf32>
    %151 = arith.divf %149, %150 : vector<64x1xf32>
    %152 = vector.broadcast %151 : vector<64x1xf32> to vector<64x64xf32>
    %153 = arith.subf %147, %152 : vector<64x64xf32>
    %154 = arith.mulf %153, %153 : vector<64x64xf32>
    %cst_56 = arith.constant dense<0.000000e+00> : vector<64xf32>
    %155 = vector.multi_reduction <add>, %154, %cst_56 [1] : vector<64x64xf32> to vector<64xf32>
    %156 = vector.shape_cast %155 : vector<64xf32> to vector<64x1xf32>
    %cst_57 = arith.constant 6.400000e+01 : f32
    %157 = vector.broadcast %cst_57 : f32 to vector<64x1xf32>
    %158 = arith.divf %156, %157 : vector<64x1xf32>
    %159 = vector.broadcast %151 : vector<64x1xf32> to vector<64x64xf32>
    %160 = arith.subf %147, %159 : vector<64x64xf32>
    %cst_58 = arith.constant 9.99999974E-6 : f32
    %161 = vector.broadcast %cst_58 : f32 to vector<64x1xf32>
    %162 = arith.addf %158, %161 : vector<64x1xf32>
    %163 = math.rsqrt %162 : vector<64x1xf32>
    %164 = vector.broadcast %163 : vector<64x1xf32> to vector<64x64xf32>
    %165 = arith.mulf %160, %164 : vector<64x64xf32>
    %166 = vector.broadcast %13 : vector<1x64xf32> to vector<64x64xf32>
    %167 = arith.mulf %165, %166 : vector<64x64xf32>
    %168 = vector.broadcast %15 : vector<1x64xf32> to vector<64x64xf32>
    %169 = arith.addf %167, %168 : vector<64x64xf32>
    %170 = vector.shape_cast %169 : vector<64x64xf32> to vector<4x16x64xf32>
    %c0_59 = arith.constant 0 : index
    %c0_60 = arith.constant 0 : index
    %c0_61 = arith.constant 0 : index
    %171 = vector.load %arg7[%c0_59, %c0_60, %c0_61] : memref<4x16x64xf32, #tpu.memory_space<vmem>>, vector<4x16x64xf32>
    tpu.vector_store %arg7[%c0_59, %c0_60, %c0_61], %170 {strides = array<i32>} : memref<4x16x64xf32, #tpu.memory_space<vmem>>, vector<4x16x64xf32>,
    return
  }
  func.func @transform_0(%arg0: i32) -> (i32, i32, i32) {
    %c0_i32 = arith.constant 0 : i32
    %c0_i32_0 = arith.constant 0 : i32
    %c0_i32_1 = arith.constant 0 : i32
    return %arg0, %c0_i32, %c0_i32_0 : i32, i32, i32
  }
  func.func @transform_1(%arg0: i32) -> (i32, i32, i32) {
    %c0_i32 = arith.constant 0 : i32
    %c0_i32_0 = arith.constant 0 : i32
    %c0_i32_1 = arith.constant 0 : i32
    %c0_i32_2 = arith.constant 0 : i32
    return %c0_i32, %c0_i32_0, %c0_i32_1 : i32, i32, i32
  }
  func.func @transform_2(%arg0: i32) -> (i32, i32, i32) {
    %c0_i32 = arith.constant 0 : i32
    %c0_i32_0 = arith.constant 0 : i32
    %c0_i32_1 = arith.constant 0 : i32
    %c0_i32_2 = arith.constant 0 : i32
    return %c0_i32, %c0_i32_0, %c0_i32_1 : i32, i32, i32
  }
  func.func @transform_3(%arg0: i32) -> (i32, i32, i32) {
    %c0_i32 = arith.constant 0 : i32
    %c0_i32_0 = arith.constant 0 : i32
    %c0_i32_1 = arith.constant 0 : i32
    %c0_i32_2 = arith.constant 0 : i32
    return %c0_i32, %c0_i32_0, %c0_i32_1 : i32, i32, i32
  }
  func.func @transform_4(%arg0: i32) -> (i32, i32, i32) {
    %c0_i32 = arith.constant 0 : i32
    %c0_i32_0 = arith.constant 0 : i32
    %c0_i32_1 = arith.constant 0 : i32
    %c0_i32_2 = arith.constant 0 : i32
    return %c0_i32, %c0_i32_0, %c0_i32_1 : i32, i32, i32
  }
  func.func @transform_5(%arg0: i32) -> (i32, i32, i32) {
    %c0_i32 = arith.constant 0 : i32
    %c0_i32_0 = arith.constant 0 : i32
    %c0_i32_1 = arith.constant 0 : i32
    %c0_i32_2 = arith.constant 0 : i32
    return %c0_i32, %c0_i32_0, %c0_i32_1 : i32, i32, i32
  }
  func.func @transform_6(%arg0: i32) -> (i32, i32, i32) {
    %c0_i32 = arith.constant 0 : i32
    %c0_i32_0 = arith.constant 0 : i32
    %c0_i32_1 = arith.constant 0 : i32
    return %arg0, %c0_i32, %c0_i32_0 : i32, i32, i32
  }
}

</mosaic_0001>

<llo_original>
// kernel: tpu_custom_call.1
$region0: #{tpu_custom_call.1}
  #allocation0 [shape = 'u32[]', space=smem, size = 0x4, offset = 0x4, fixed_abs, tag = 'smem constant byte address 0x4 - core index']
  #allocation1 [shape = 'u32[72,128]{1,0:T(1,128)}', space=vmem, size = 0x9000, scoped, tag = 'internal scratch']
  %s0 = inlined_call_operand.hbm [shape: f32[8,16,64], index: 0, kind: input, shape index: {}]
  %s1 = inlined_call_operand.hbm [shape: bf16[1,64,192], index: 1, kind: input, shape index: {}]
  %s2 = inlined_call_operand.hbm [shape: bf16[1,64,64], index: 2, kind: input, shape index: {}]
  %s3 = inlined_call_operand.hbm [shape: bf16[1,64,64], index: 3, kind: input, shape index: {}]
  %s4 = inlined_call_operand.hbm [shape: bf16[1,64,64], index: 4, kind: input, shape index: {}]
  %s5 = inlined_call_operand.hbm [shape: f32[1,8,64], index: 5, kind: input, shape index: {}]
  %s6 = inlined_call_operand.hbm [shape: f32[8,16,64], index: 6, kind: output, shape index: {}]
  %s7 = sld [smem:[#allocation0]]
  $region81: #{tpu_custom_call.1} parent=0
    _
  %s9 = ssub.s32 1, %s7
  %s10 = scalar_select 0, %s9, %s7
  $region1: #{tpu_custom_call.1} parent=0
    #allocation2 [shape = 'u8[65536]{0}', space=vmem, size = 0x10000, scoped, tag = 'input window, operand 0']
    #allocation3 [shape = 's32[2]{0}', space=sflag, size = 0x8, scoped, tag = 'scoped memory for tpu_custom_call.1']
    #allocation4 [shape = 's32[2]{0}', space=sflag, size = 0x8, scoped, tag = 'scoped memory for tpu_custom_call.1']
    #allocation5 [shape = 'u8[32768]{0}', space=vmem, size = 0x8000, scoped, tag = 'input window, operand 1, single buffered']
    #allocation6 [shape = 's32[1]{0}', space=sflag, size = 0x4, scoped, tag = 'scoped memory for tpu_custom_call.1']
    #allocation7 [shape = 'u8[16384]{0}', space=vmem, size = 0x4000, scoped, tag = 'input window, operand 2, single buffered']
    #allocation8 [shape = 'u8[16384]{0}', space=vmem, size = 0x4000, scoped, tag = 'input window, operand 3, single buffered']
    #allocation9 [shape = 's32[1]{0}', space=sflag, size = 0x4, scoped, tag = 'scoped memory for tpu_custom_call.1']
    #allocation10 [shape = 'u8[16384]{0}', space=vmem, size = 0x4000, scoped, tag = 'input window, operand 4, single buffered']
    #allocation11 [shape = 'u8[4096]{0}', space=vmem, size = 0x1000, scoped, tag = 'input window, operand 5, single buffered']
    #allocation12 [shape = 's32[1]{0}', space=sflag, size = 0x4, scoped, tag = 'scoped memory for tpu_custom_call.1']
    #allocation13 [shape = 'u8[65536]{0}', space=vmem, size = 0x10000, scoped, tag = 'output window, operand 0']
    %11 = vsyncpa [#allocation3], 0
    %s12 = scalar_lea.sflag [#allocation3], 1
    %13 = vsyncpa %s12, 0
    %14 = vsyncpa [#allocation6], 0
    %15 = vsyncpa [#allocation9], 0
    %16 = vsyncpa [#allocation12], 0
    %17 = vsyncpa [#allocation4], 0
    %s18 = scalar_lea.sflag [#allocation4], 1
    %19 = vsyncpa %s18, 0
    loop: start=0, step=1, limit=4
    $region2: #{tpu_custom_call.1} parent=1 // loop_pre_header
      _
    $region3: #{tpu_custom_call.1} parent=1 // loop_header
      %s21 = sphi 0, %s25
      %p22 = scmp.ge.s32.totalorder %s21, 4
      %s31 = sphi 0, %s33
      %s34 = sphi 0, %s31
      %s35 = sphi 0, %s34
      %s51 = sphi 0, %s35
      %s55 = sphi 0, %s55
      %s57 = sphi 0, %s55
      %s58 = sphi 0, %s57
      %s72 = sphi 0, %s58
      %s76 = sphi 0, %s76
      %s78 = sphi 0, %s76
      %s79 = sphi 0, %s78
      %s93 = sphi 0, %s79
      %s97 = sphi 0, %s97
      %s99 = sphi 0, %s97
      %s100 = sphi 0, %s99
      %s114 = sphi 0, %s100
      %s118 = sphi 0, %s118
      %s120 = sphi 0, %s118
      %s121 = sphi 0, %s120
      %s135 = sphi 0, %s121
      %s139 = sphi 0, %s139
      %s141 = sphi 0, %s139
      %s142 = sphi 0, %s141
      %s156 = sphi 0, %s142
      %s162 = sphi 0, %s164
      %s165 = sphi 0, %s162
      %s166 = sphi 0, %s165
      %s182 = sphi 0, %s166
    $region4: #{tpu_custom_call.1} parent=1 // loop_header_branch
      %24 = sbr.rel (%p22) target = $region8
    $region5: #{tpu_custom_call.1} parent=1 // loop_body
      %s26 = ssub.s32 %s21, 1
      %s27 = ssub.s32 %s21, 2
      %s28 = sadd.s32 %s21, 1
      %s29 = ssub.s32 %s21, %s28
      %p30 = scmp.eq.s32.totalorder %s29, 0
      %s32 = sadd.s32 %s31, 1
      %s33 = scalar_select %p30, %s31, %s32
      %p36 = pneg %p30
      %p37 = scmp.eq.s32.totalorder %s21, 1
      %p38 = por %p36, %p37
      %p39 = scmp.ne.s32.totalorder %s31, %s34
      %p40 = scmp.eq.s32.totalorder %s21, 0
      %p41 = por %p39, %p40
      %p42 = scmp.ne.s32.totalorder %s31, %s34
      %p43 = scmp.eq.s32.totalorder %s26, 1
      %p44 = por %p42, %p43
      %p45 = scmp.ne.s32.totalorder %s34, %s35
      %p46 = scmp.eq.s32.totalorder %s26, 0
      %p47 = por %p45, %p46
      %p48 = scmp.ne.s32.totalorder %s34, %s35
      %p49 = scmp.eq.s32.totalorder %s27, 1
      %p50 = por %p48, %p49
      %p52 = scmp.ne.s32.totalorder %s35, %s51
      %p53 = scmp.eq.s32.totalorder %s27, 0
      %p54 = por %p52, %p53
      %s56 = sadd.s32 %s55, 1
      %p59 = scmp.eq.s32.totalorder %s21, 1
      %p60 = scmp.ne.s32.totalorder %s55, %s57
      %p61 = scmp.eq.s32.totalorder %s21, 0
      %p62 = por %p60, %p61
      %p63 = scmp.ne.s32.totalorder %s55, %s57
      %p64 = scmp.eq.s32.totalorder %s26, 1
      %p65 = por %p63, %p64
      %p66 = scmp.ne.s32.totalorder %s57, %s58
      %p67 = scmp.eq.s32.totalorder %s26, 0
      %p68 = por %p66, %p67
      %p69 = scmp.ne.s32.totalorder %s57, %s58
      %p70 = scmp.eq.s32.totalorder %s27, 1
      %p71 = por %p69, %p70
      %p73 = scmp.ne.s32.totalorder %s58, %s72
      %p74 = scmp.eq.s32.totalorder %s27, 0
      %p75 = por %p73, %p74
      %s77 = sadd.s32 %s76, 1
      %p80 = scmp.eq.s32.totalorder %s21, 1
      %p81 = scmp.ne.s32.totalorder %s76, %s78
      %p82 = scmp.eq.s32.totalorder %s21, 0
      %p83 = por %p81, %p82
      %p84 = scmp.ne.s32.totalorder %s76, %s78
      %p85 = scmp.eq.s32.totalorder %s26, 1
      %p86 = por %p84, %p85
      %p87 = scmp.ne.s32.totalorder %s78, %s79
      %p88 = scmp.eq.s32.totalorder %s26, 0
      %p89 = por %p87, %p88
      %p90 = scmp.ne.s32.totalorder %s78, %s79
      %p91 = scmp.eq.s32.totalorder %s27, 1
      %p92 = por %p90, %p91
      %p94 = scmp.ne.s32.totalorder %s79, %s93
      %p95 = scmp.eq.s32.totalorder %s27, 0
      %p96 = por %p94, %p95
      %s98 = sadd.s32 %s97, 1
      %p101 = scmp.eq.s32.totalorder %s21, 1
      %p102 = scmp.ne.s32.totalorder %s97, %s99
      %p103 = scmp.eq.s32.totalorder %s21, 0
      %p104 = por %p102, %p103
      %p105 = scmp.ne.s32.totalorder %s97, %s99
      %p106 = scmp.eq.s32.totalorder %s26, 1
      %p107 = por %p105, %p106
      %p108 = scmp.ne.s32.totalorder %s99, %s100
      %p109 = scmp.eq.s32.totalorder %s26, 0
      %p110 = por %p108, %p109
      %p111 = scmp.ne.s32.totalorder %s99, %s100
      %p112 = scmp.eq.s32.totalorder %s27, 1
      %p113 = por %p111, %p112
      %p115 = scmp.ne.s32.totalorder %s100, %s114
      %p116 = scmp.eq.s32.totalorder %s27, 0
      %p117 = por %p115, %p116
      %s119 = sadd.s32 %s118, 1
      %p122 = scmp.eq.s32.totalorder %s21, 1
      %p123 = scmp.ne.s32.totalorder %s118, %s120
      %p124 = scmp.eq.s32.totalorder %s21, 0
      %p125 = por %p123, %p124
      %p126 = scmp.ne.s32.totalorder %s118, %s120
      %p127 = scmp.eq.s32.totalorder %s26, 1
      %p128 = por %p126, %p127
      %p129 = scmp.ne.s32.totalorder %s120, %s121
      %p130 = scmp.eq.s32.totalorder %s26, 0
      %p131 = por %p129, %p130
      %p132 = scmp.ne.s32.totalorder %s120, %s121
      %p133 = scmp.eq.s32.totalorder %s27, 1
      %p134 = por %p132, %p133
      %p136 = scmp.ne.s32.totalorder %s121, %s135
      %p137 = scmp.eq.s32.totalorder %s27, 0
      %p138 = por %p136, %p137
      %s140 = sadd.s32 %s139, 1
      %p143 = scmp.eq.s32.totalorder %s21, 1
      %p144 = scmp.ne.s32.totalorder %s139, %s141
      %p145 = scmp.eq.s32.totalorder %s21, 0
      %p146 = por %p144, %p145
      %p147 = scmp.ne.s32.totalorder %s139, %s141
      %p148 = scmp.eq.s32.totalorder %s26, 1
      %p149 = por %p147, %p148
      %p150 = scmp.ne.s32.totalorder %s141, %s142
      %p151 = scmp.eq.s32.totalorder %s26, 0
      %p152 = por %p150, %p151
      %p153 = scmp.ne.s32.totalorder %s141, %s142
      %p154 = scmp.eq.s32.totalorder %s27, 1
      %p155 = por %p153, %p154
      %p157 = scmp.ne.s32.totalorder %s142, %s156
      %p158 = scmp.eq.s32.totalorder %s27, 0
      %p159 = por %p157, %p158
      %s160 = ssub.s32 %s21, %s28
      %p161 = scmp.eq.s32.totalorder %s160, 0
      %s163 = sadd.s32 %s162, 1
      %s164 = scalar_select %p161, %s162, %s163
      %p167 = pneg %p161
      %p168 = scmp.eq.s32.totalorder %s21, 1
      %p169 = por %p167, %p168
      %p170 = scmp.ne.s32.totalorder %s162, %s165
      %p171 = scmp.eq.s32.totalorder %s21, 0
      %p172 = por %p170, %p171
      %p173 = scmp.ne.s32.totalorder %s162, %s165
      %p174 = scmp.eq.s32.totalorder %s26, 1
      %p175 = por %p173, %p174
      %p176 = scmp.ne.s32.totalorder %s165, %s166
      %p177 = scmp.eq.s32.totalorder %s26, 0
      %p178 = por %p176, %p177
      %p179 = scmp.ne.s32.totalorder %s165, %s166
      %p180 = scmp.eq.s32.totalorder %s27, 1
      %p181 = por %p179, %p180
      %p183 = scmp.ne.s32.totalorder %s166, %s182
      %p184 = scmp.eq.s32.totalorder %s27, 0
      %p185 = por %p183, %p184
      %p186 = scmp.le.s32.totalorder 1, %s21
      %p187 = scmp.lt.s32.totalorder %s21, 3
      %p188 = pnand %p186, %p187
      %p189 = pneg %p188
      // Predicated region
      $region9: #{tpu_custom_call.1} parent=5 // pred_check
        _
      $region10: #{tpu_custom_call.1} parent=5 // pred_check_branch
        %191 = sbr.rel (%p188) target = $region12
      $region11: #{tpu_custom_call.1} parent=5 // pred_region
        %s192 = ssub.s32 %s21, 1
        // Predicated region
        $region13: #{tpu_custom_call.1} parent=11 // pred_check
          %p193 = pneg %p68
        $region14: #{tpu_custom_call.1} parent=11 // pred_check_branch
          %195 = sbr.rel (%p193) target = $region16
        $region15: #{tpu_custom_call.1} parent=11 // pred_region
          %197 = vsyncadd [#allocation6], 0
          %s198 = sshll.u32 %s1, 4
          %s199 = int_to_ptr.hbm [resolvable:$true] %s198
          %s200 = sshll.u32 [#allocation5], 4
          %s201 = int_to_ptr.vmem [resolvable:$true] %s200
          %206 = dma.hbm_to_vmem [thread:$0]  %s199, 1024, %s201, [#allocation6], 128, 128, 8
        $region16: #{tpu_custom_call.1} parent=11 // pred_fallthru
          _
        // Predicated region
        $region17: #{tpu_custom_call.1} parent=11 // pred_check
          %p207 = pneg %p89
        $region18: #{tpu_custom_call.1} parent=11 // pred_check_branch
          %209 = sbr.rel (%p207) target = $region20
        $region19: #{tpu_custom_call.1} parent=11 // pred_region
          %211 = vsyncadd [#allocation6], 0
          %s212 = sshll.u32 %s2, 4
          %s213 = int_to_ptr.hbm [resolvable:$true] %s212
          %s214 = sshll.u32 [#allocation7], 4
          %s215 = int_to_ptr.vmem [resolvable:$true] %s214
          %220 = dma.hbm_to_vmem [thread:$0]  %s213, 512, %s215, [#allocation6], 64, 64, 4
        $region20: #{tpu_custom_call.1} parent=11 // pred_fallthru
          _
        // Predicated region
        $region21: #{tpu_custom_call.1} parent=11 // pred_check
          %p221 = pneg %p110
        $region22: #{tpu_custom_call.1} parent=11 // pred_check_branch
          %223 = sbr.rel (%p221) target = $region24
        $region23: #{tpu_custom_call.1} parent=11 // pred_region
          %225 = vsyncadd [#allocation9], 0
          %s226 = sshll.u32 %s3, 4
          %s227 = int_to_ptr.hbm [resolvable:$true] %s226
          %s228 = sshll.u32 [#allocation8], 4
          %s229 = int_to_ptr.vmem [resolvable:$true] %s228
          %234 = dma.hbm_to_vmem [thread:$0]  %s227, 512, %s229, [#allocation9], 64, 64, 4
        $region24: #{tpu_custom_call.1} parent=11 // pred_fallthru
          _
        // Predicated region
        $region25: #{tpu_custom_call.1} parent=11 // pred_check
          %p235 = pneg %p131
        $region26: #{tpu_custom_call.1} parent=11 // pred_check_branch
          %237 = sbr.rel (%p235) target = $region28
        $region27: #{tpu_custom_call.1} parent=11 // pred_region
          %239 = vsyncadd [#allocation9], 0
          %s240 = sshll.u32 %s4, 4
          %s241 = int_to_ptr.hbm [resolvable:$true] %s240
          %s242 = sshll.u32 [#allocation10], 4
          %s243 = int_to_ptr.vmem [resolvable:$true] %s242
          %248 = dma.hbm_to_vmem [thread:$0]  %s241, 512, %s243, [#allocation9], 64, 64, 4
        $region28: #{tpu_custom_call.1} parent=11 // pred_fallthru
          _
        // Predicated region
        $region29: #{tpu_custom_call.1} parent=11 // pred_check
          %p249 = pneg %p152
        $region30: #{tpu_custom_call.1} parent=11 // pred_check_branch
          %251 = sbr.rel (%p249) target = $region32
        $region31: #{tpu_custom_call.1} parent=11 // pred_region
          %253 = vsyncadd [#allocation12], 0
          %s255 = sshll.u32 %s5, 4
          %s256 = int_to_ptr.hbm [resolvable:$true] %s255
          %s257 = sshll.u32 [#allocation11], 4
          %s258 = int_to_ptr.vmem [resolvable:$true] %s257
          %260 = dma.hbm_to_vmem [thread:$0]  %s256, 128, %s258, [#allocation12]
        $region32: #{tpu_custom_call.1} parent=11 // pred_fallthru
          _
      $region12: #{tpu_custom_call.1} parent=5 // pred_fallthru
        _
      %p261 = scmp.lt.s32.totalorder %s21, 2
      // Predicated region
      $region33: #{tpu_custom_call.1} parent=5 // pred_check
        %p262 = pneg %p261
      $region34: #{tpu_custom_call.1} parent=5 // pred_check_branch
        %264 = sbr.rel (%p262) target = $region36
      $region35: #{tpu_custom_call.1} parent=5 // pred_region
        // Predicated region
        $region37: #{tpu_custom_call.1} parent=35 // pred_check
          %p265 = pneg %p41
        $region38: #{tpu_custom_call.1} parent=35 // pred_check_branch
          %267 = sbr.rel (%p265) target = $region40
        $region39: #{tpu_custom_call.1} parent=35 // pred_region
          %s268 = sand.u32 %s31, 1
          %s269 = scalar_lea.sflag [#allocation3], %s268
          %s270 = sand.u32 %s31, 1
          %s271 = smul.addr %s270, 64
          %s272 = scalar_lea.vmem [#allocation2], %s271
          %s273 = smul.u32 4, %s21
          %275 = vsyncadd %s269, 0
          %s276 = smul.addr %s273, 2
          %s277 = smul.addr %s276, 8
          %s278 = scalar_lea.hbm %s0, %s277
          %s279 = sshll.u32 %s278, 4
          %s280 = int_to_ptr.hbm [resolvable:$true] %s279
          %s281 = sshll.u32 %s272, 4
          %s282 = int_to_ptr.vmem [resolvable:$true] %s281
          %287 = dma.hbm_to_vmem [thread:$0]  %s280, 1024, %s282, %s269, 128, 128, 8
        $region40: #{tpu_custom_call.1} parent=35 // pred_fallthru
          _
      $region36: #{tpu_custom_call.1} parent=5 // pred_fallthru
        _
      %p288 = scmp.le.s32.totalorder 1, %s21
      %p289 = scmp.lt.s32.totalorder %s21, 3
      %p290 = pnand %p288, %p289
      %p291 = pneg %p290
      // Predicated region
      $region41: #{tpu_custom_call.1} parent=5 // pred_check
        _
      $region42: #{tpu_custom_call.1} parent=5 // pred_check_branch
        %293 = sbr.rel (%p290) target = $region44
      $region43: #{tpu_custom_call.1} parent=5 // pred_region
        %s294 = ssub.s32 %s21, 1
        %s295 = sand.u32 %s34, 1
        %s296 = scalar_lea.sflag [#allocation3], %s295
        %s297 = sand.u32 %s34, 1
        %s298 = smul.addr %s297, 64
        %s299 = scalar_lea.vmem [#allocation2], %s298
        // Predicated region
        $region45: #{tpu_custom_call.1} parent=43 // pred_check
          %p300 = pneg %p47
        $region46: #{tpu_custom_call.1} parent=43 // pred_check_branch
          %302 = sbr.rel (%p300) target = $region48
        $region47: #{tpu_custom_call.1} parent=43 // pred_region
          %304 = dma.done %s296, 1024
        $region48: #{tpu_custom_call.1} parent=43 // pred_fallthru
          _
        // Predicated region
        $region49: #{tpu_custom_call.1} parent=43 // pred_check
          %p305 = pneg %p68
        $region50: #{tpu_custom_call.1} parent=43 // pred_check_branch
          %307 = sbr.rel (%p305) target = $region52
        $region51: #{tpu_custom_call.1} parent=43 // pred_region
          %309 = dma.done [#allocation6], 1024
        $region52: #{tpu_custom_call.1} parent=43 // pred_fallthru
          _
        // Predicated region
        $region53: #{tpu_custom_call.1} parent=43 // pred_check
          %p310 = pneg %p89
        $region54: #{tpu_custom_call.1} parent=43 // pred_check_branch
          %312 = sbr.rel (%p310) target = $region56
        $region55: #{tpu_custom_call.1} parent=43 // pred_region
          %314 = dma.done [#allocation6], 512
        $region56: #{tpu_custom_call.1} parent=43 // pred_fallthru
          _
        // Predicated region
        $region57: #{tpu_custom_call.1} parent=43 // pred_check
          %p315 = pneg %p110
        $region58: #{tpu_custom_call.1} parent=43 // pred_check_branch
          %317 = sbr.rel (%p315) target = $region60
        $region59: #{tpu_custom_call.1} parent=43 // pred_region
          %319 = dma.done [#allocation9], 512
        $region60: #{tpu_custom_call.1} parent=43 // pred_fallthru
          _
        // Predicated region
        $region61: #{tpu_custom_call.1} parent=43 // pred_check
          %p320 = pneg %p131
        $region62: #{tpu_custom_call.1} parent=43 // pred_check_branch
          %322 = sbr.rel (%p320) target = $region64
        $region63: #{tpu_custom_call.1} parent=43 // pred_region
          %324 = dma.done [#allocation9], 512
        $region64: #{tpu_custom_call.1} parent=43 // pred_fallthru
          _
        // Predicated region
        $region65: #{tpu_custom_call.1} parent=43 // pred_check
          %p325 = pneg %p152
        $region66: #{tpu_custom_call.1} parent=43 // pred_check_branch
          %327 = sbr.rel (%p325) target = $region68
        $region67: #{tpu_custom_call.1} parent=43 // pred_region
          %329 = dma.done [#allocation12], 128
        $region68: #{tpu_custom_call.1} parent=43 // pred_fallthru
          _
        %s330 = sand.u32 %s34, 1
        %s331 = scalar_lea.sflag [#allocation3], %s330
        %s332 = sand.u32 %s34, 1
        %s333 = smul.addr %s332, 64
        %s334 = scalar_lea.vmem [#allocation2], %s333
        %p335 = pneg %p47
        %p336 = pneg %p44
        %p337 = pneg %p68
        %p338 = pneg %p65
        %p339 = pneg %p89
        %p340 = pneg %p86
        %p341 = pneg %p110
        %p342 = pneg %p107
        %p343 = pneg %p131
        %p344 = pneg %p128
        %p345 = pneg %p152
        %p346 = pneg %p149
        %p347 = pneg %p178
        %p348 = pneg %p175
        %s349 = sand.u32 %s165, 1
        %s350 = scalar_lea.sflag [#allocation4], %s349
        %s351 = sand.u32 %s165, 1
        %s352 = smul.addr %s351, 64
        %s353 = scalar_lea.vmem [#allocation13], %s352
        %s354 = smul.u32 4, %s26
        %s355 = smul.u32 4, %s26
        %v357 = vld [vmem:[%s299] sm:$0xff]
        %v358 = vld [vmem:[%s299 + $0x8] sm:$0xff]
        %v359 = vld [vmem:[%s299 + $0x10] sm:$0xff]
        %v360 = vld [vmem:[%s299 + $0x18] sm:$0xff]
        %v361 = vld [vmem:[%s299 + $0x20] sm:$0xff]
        %v362 = vld [vmem:[%s299 + $0x28] sm:$0xff]
        %v363 = vld [vmem:[%s299 + $0x30] sm:$0xff]
        %v364 = vld [vmem:[%s299 + $0x38] sm:$0xff]
        %v365 = vld [vmem:[#allocation11] sm:$0x1]
        %v366 = vld [vmem:[#allocation11 + $0x1] sm:$0x1]
        %v367 = vld [vmem:[#allocation11 + $0x2] sm:$0x1]
        %v368 = vld [vmem:[#allocation11 + $0x3] sm:$0x1]
        %v369 = vld [vmem:[#allocation11 + $0x4] sm:$0x1]
        %v370 = vld [vmem:[#allocation11 + $0x5] sm:$0x1]
        %v371 = vld [vmem:[#allocation11 + $0x6] sm:$0x1]
        %v372 = vpack.c.bf16 %v358, %v357
        %v373 = vpack.c.bf16 %v360, %v359
        %v374 = vpack.c.bf16 %v362, %v361
        %v375 = vpack.c.bf16 %v364, %v363
        %v376 = vld [vmem:[#allocation5] sm:$0xff]
        %v377 = vld [vmem:[#allocation5 + $0x8] sm:$0xff]
        %v378 = vld [vmem:[#allocation5 + $0x10] sm:$0xff]
        %v379 = vld [vmem:[#allocation5 + $0x18] sm:$0xff]
        %v380 = vld [vmem:[#allocation5 + $0x20] sm:$0xff]
        %v381 = vld [vmem:[#allocation5 + $0x28] sm:$0xff]
        %v382 = vld [vmem:[#allocation5 + $0x30] sm:$0xff]
        %v383 = vld [vmem:[#allocation5 + $0x38] sm:$0xff]
        %v392 = vunpack.c.l.b16 %v376
        %v393 = vunpack.c.h.b16 %v376
        %v394 = vunpack.c.l.b16 %v377
        %v395 = vunpack.c.h.b16 %v377
        %v396 = vunpack.c.l.b16 %v378
        %v397 = vunpack.c.h.b16 %v378
        %v398 = vunpack.c.l.b16 %v379
        %v399 = vunpack.c.h.b16 %v379
        %v400 = vunpack.c.l.b16 %v380
        %v401 = vunpack.c.h.b16 %v380
        %v402 = vunpack.c.l.b16 %v381
        %v403 = vunpack.c.h.b16 %v381
        %v404 = vunpack.c.l.b16 %v382
        %v405 = vunpack.c.h.b16 %v382
        %v406 = vunpack.c.l.b16 %v383
        %v407 = vunpack.c.h.b16 %v383
        %v408 = vpack.c.b16 %v394, %v392
        %v409 = vpack.c.b16 %v395, %v393
        %v410 = vpack.c.b16 %v398, %v396
        %v411 = vpack.c.b16 %v399, %v397
        %v412 = vpack.c.b16 %v402, %v400
        %v413 = vpack.c.b16 %v403, %v401
        %v414 = vpack.c.b16 %v406, %v404
        %v415 = vpack.c.b16 %v407, %v405
        %vm424 = vcmask 523264
        %v426 = vsel %vm424, %v372, 0
        %v429 = vsel %vm424, %v373, 0
        %v432 = vsel %vm424, %v374, 0
        %v435 = vsel %vm424, %v375, 0
        %437 = vmatpush.bf16.msra.mxu0 0
        %438 = vmatpush.bf16.msra.mxu0 0
        %439 = vmatpush.bf16.msra.mxu0 0
        %440 = vmatpush.bf16.msra.mxu0 0
        %441 = vmatpush.bf16.msra.mxu0 %v414
        %442 = vmatpush.bf16.msra.mxu0 %v412
        %443 = vmatpush.bf16.msra.mxu0 %v410
        %444 = vmatpush.bf16.msra.mxu0 %v408
        %445 = vmatmul.bf16.gmra.mxu0 %v426
        %v446 = vpop.f32.mrf.mxu0
        %v447 = vadd.f32 0.0, %v446
        %v448 = vpop.f32.mrf.mxu0
        %v449 = vadd.f32 0.0, %v448
        %450 = vmatmul.bf16.gmra.mxu0 %v429
        %v451 = vpop.f32.mrf.mxu0
        %v452 = vadd.f32 0.0, %v451
        %v453 = vpop.f32.mrf.mxu0
        %v454 = vadd.f32 0.0, %v453
        %455 = vmatmul.bf16.gmra.mxu0 %v432
        %v456 = vpop.f32.mrf.mxu0
        %v457 = vadd.f32 0.0, %v456
        %v458 = vpop.f32.mrf.mxu0
        %v459 = vadd.f32 0.0, %v458
        %460 = vmatmul.bf16.gmra.mxu0 %v435
        %v461 = vpop.f32.mrf.mxu0
        %v462 = vadd.f32 0.0, %v461
        %v463 = vpop.f32.mrf.mxu0
        %v464 = vadd.f32 0.0, %v463
        %465 = vdwg.mxu0
        %466 = vmatpush.bf16.msra.mxu0 0
        %467 = vmatpush.bf16.msra.mxu0 0
        %468 = vmatpush.bf16.msra.mxu0 0
        %469 = vmatpush.bf16.msra.mxu0 0
        %470 = vmatpush.bf16.msra.mxu0 %v415
        %471 = vmatpush.bf16.msra.mxu0 %v413
        %472 = vmatpush.bf16.msra.mxu0 %v411
        %473 = vmatpush.bf16.msra.mxu0 %v409
        %474 = vmatmul.bf16.gmra.mxu0 %v426
        %v475 = vpop.f32.mrf.mxu0
        %v476 = vadd.f32 0.0, %v475
        %v477 = vpop.f32.mrf.mxu0
        %v478 = vadd.f32 0.0, %v477
        %479 = vmatmul.bf16.gmra.mxu0 %v429
        %v480 = vpop.f32.mrf.mxu0
        %v481 = vadd.f32 0.0, %v480
        %v482 = vpop.f32.mrf.mxu0
        %v483 = vadd.f32 0.0, %v482
        %484 = vmatmul.bf16.gmra.mxu0 %v432
        %v485 = vpop.f32.mrf.mxu0
        %v486 = vadd.f32 0.0, %v485
        %v487 = vpop.f32.mrf.mxu0
        %v488 = vadd.f32 0.0, %v487
        %489 = vmatmul.bf16.gmra.mxu0 %v435
        %v490 = vpop.f32.mrf.mxu0
        %v491 = vadd.f32 0.0, %v490
        %v492 = vpop.f32.mrf.mxu0
        %v493 = vadd.f32 0.0, %v492
        %494 = vdwg.mxu0
        %v495 = vpack.c.bf16 %v447, %v447
        %v496 = vpack.c.bf16 %v449, %v449
        %v497 = vpack.c.bf16 %v452, %v452
        %v498 = vpack.c.bf16 %v454, %v454
        %v499 = vpack.c.bf16 %v457, %v457
        %v500 = vpack.c.bf16 %v459, %v459
        %v501 = vpack.c.bf16 %v462, %v462
        %v502 = vpack.c.bf16 %v464, %v464
        %v503 = vpack.c.bf16 %v476, %v476
        %v504 = vpack.c.bf16 %v478, %v478
        %v505 = vpack.c.bf16 %v481, %v481
        %v506 = vpack.c.bf16 %v483, %v483
        %v507 = vpack.c.bf16 %v486, %v486
        %v508 = vpack.c.bf16 %v488, %v488
        %v509 = vpack.c.bf16 %v491, %v491
        %v510 = vpack.c.bf16 %v493, %v493
        %v513 = vunpack.c.l.b16 %v495
        %v514 = vunpack.c.l.b16 %v496
        %v515 = vpack.c.b16 %v514, %v513
        %516 = vrot.lane.b32.xlu0 %v515, 64
        %v517 = vpop.permute.xlu0 %516
        %vm518 = vcmask 130048
        %v520 = vsel %vm518, %v515, 0
        %v523 = vsel %vm518, %v517, 0
        %525 = vmatpush.bf16.xpose.msra.mxu0 0
        %526 = vmatpush.bf16.xpose.msra.mxu0 0
        %527 = vmatpush.bf16.xpose.msra.mxu0 0
        %528 = vmatpush.bf16.xpose.msra.mxu0 0
        %529 = vmatpush.bf16.xpose.msra.mxu0 0
        %530 = vmatpush.bf16.xpose.msra.mxu0 0
        %531 = vmatpush.bf16.xpose.msra.mxu0 0
        %532 = vmatpush.bf16.xpose.msra.mxu0 %v523
        %533 = vmatmul.bf16.gmra.mxu0 %v520
        %v534 = vpop.f32.mrf.mxu0
        %v535 = vadd.f32 0.0, %v534
        %v536 = vpop.f32.mrf.mxu0
        %v537 = vadd.f32 0.0, %v536
        %538 = vdwg.mxu0
        %v541 = vunpack.c.l.b16 %v497
        %v542 = vunpack.c.l.b16 %v498
        %v543 = vpack.c.b16 %v542, %v541
        %544 = vrot.lane.b32.xlu0 %v543, 64
        %v545 = vpop.permute.xlu0 %544
        %v547 = vsel %vm518, %v543, 0
        %v550 = vsel %vm518, %v545, 0
        %552 = vmatpush.bf16.xpose.msra.mxu0 0
        %553 = vmatpush.bf16.xpose.msra.mxu0 0
        %554 = vmatpush.bf16.xpose.msra.mxu0 0
        %555 = vmatpush.bf16.xpose.msra.mxu0 0
        %556 = vmatpush.bf16.xpose.msra.mxu0 0
        %557 = vmatpush.bf16.xpose.msra.mxu0 0
        %558 = vmatpush.bf16.xpose.msra.mxu0 0
        %559 = vmatpush.bf16.xpose.msra.mxu0 %v550
        %560 = vmatmul.bf16.gmra.mxu0 %v547
        %v561 = vpop.f32.mrf.mxu0
        %v562 = vadd.f32 0.0, %v561
        %v563 = vpop.f32.mrf.mxu0
        %v564 = vadd.f32 0.0, %v563
        %565 = vdwg.mxu0
        %v568 = vunpack.c.l.b16 %v499
        %v569 = vunpack.c.l.b16 %v500
        %v570 = vpack.c.b16 %v569, %v568
        %571 = vrot.lane.b32.xlu0 %v570, 64
        %v572 = vpop.permute.xlu0 %571
        %v574 = vsel %vm518, %v570, 0
        %v577 = vsel %vm518, %v572, 0
        %579 = vmatpush.bf16.xpose.msra.mxu0 0
        %580 = vmatpush.bf16.xpose.msra.mxu0 0
        %581 = vmatpush.bf16.xpose.msra.mxu0 0
        %582 = vmatpush.bf16.xpose.msra.mxu0 0
        %583 = vmatpush.bf16.xpose.msra.mxu0 0
        %584 = vmatpush.bf16.xpose.msra.mxu0 0
        %585 = vmatpush.bf16.xpose.msra.mxu0 0
        %586 = vmatpush.bf16.xpose.msra.mxu0 %v577
        %587 = vmatmul.bf16.gmra.mxu0 %v574
        %v588 = vpop.f32.mrf.mxu0
        %v589 = vadd.f32 0.0, %v588
        %v590 = vpop.f32.mrf.mxu0
        %v591 = vadd.f32 0.0, %v590
        %592 = vdwg.mxu0
        %v595 = vunpack.c.l.b16 %v501
        %v596 = vunpack.c.l.b16 %v502
        %v597 = vpack.c.b16 %v596, %v595
        %598 = vrot.lane.b32.xlu0 %v597, 64
        %v599 = vpop.permute.xlu0 %598
        %v601 = vsel %vm518, %v597, 0
        %v604 = vsel %vm518, %v599, 0
        %606 = vmatpush.bf16.xpose.msra.mxu0 0
        %607 = vmatpush.bf16.xpose.msra.mxu0 0
        %608 = vmatpush.bf16.xpose.msra.mxu0 0
        %609 = vmatpush.bf16.xpose.msra.mxu0 0
        %610 = vmatpush.bf16.xpose.msra.mxu0 0
        %611 = vmatpush.bf16.xpose.msra.mxu0 0
        %612 = vmatpush.bf16.xpose.msra.mxu0 0
        %613 = vmatpush.bf16.xpose.msra.mxu0 %v604
        %614 = vmatmul.bf16.gmra.mxu0 %v601
        %v615 = vpop.f32.mrf.mxu0
        %v616 = vadd.f32 0.0, %v615
        %v617 = vpop.f32.mrf.mxu0
        %v618 = vadd.f32 0.0, %v617
        %619 = vdwg.mxu0
        %v620 = vsel %vm518, %v535, -inf
        %621 = vmax.xlane.f32.xlu0 %v620
        %v622 = vpop.xlane.xlu0 %621
        %v623 = vsel %vm518, %v537, -inf
        %624 = vmax.xlane.f32.xlu0 %v623
        %v625 = vpop.xlane.xlu0 %624
        %v626 = vsel %vm518, %v562, -inf
        %627 = vmax.xlane.f32.xlu0 %v626
        %v628 = vpop.xlane.xlu0 %627
        %v629 = vsel %vm518, %v564, -inf
        %630 = vmax.xlane.f32.xlu0 %v629
        %v631 = vpop.xlane.xlu0 %630
        %v632 = vsel %vm518, %v589, -inf
        %633 = vmax.xlane.f32.xlu0 %v632
        %v634 = vpop.xlane.xlu0 %633
        %v635 = vsel %vm518, %v591, -inf
        %636 = vmax.xlane.f32.xlu0 %v635
        %v637 = vpop.xlane.xlu0 %636
        %v638 = vsel %vm518, %v616, -inf
        %639 = vmax.xlane.f32.xlu0 %v638
        %v640 = vpop.xlane.xlu0 %639
        %v641 = vsel %vm518, %v618, -inf
        %642 = vmax.xlane.f32.xlu0 %v641
        %v643 = vpop.xlane.xlu0 %642
        %v644 = vsub.f32 %v535, %v622
        %v645 = vsub.f32 %v537, %v625
        %v646 = vsub.f32 %v562, %v628
        %v647 = vsub.f32 %v564, %v631
        %v648 = vsub.f32 %v589, %v634
        %v649 = vsub.f32 %v591, %v637
        %v650 = vsub.f32 %v616, %v640
        %v651 = vsub.f32 %v618, %v643
        %v652 = vmul.f32 %v644, 1.442695
        %v653 = vpow.pop %v652
        %v654 = vmul.f32 %v645, 1.442695
        %v655 = vpow.pop %v654
        %v656 = vmul.f32 %v646, 1.442695
        %v657 = vpow.pop %v656
        %v658 = vmul.f32 %v647, 1.442695
        %v659 = vpow.pop %v658
        %v660 = vmul.f32 %v648, 1.442695
        %v661 = vpow.pop %v660
        %v662 = vmul.f32 %v649, 1.442695
        %v663 = vpow.pop %v662
        %v664 = vmul.f32 %v650, 1.442695
        %v665 = vpow.pop %v664
        %v666 = vmul.f32 %v651, 1.442695
        %v667 = vpow.pop %v666
        %v668 = vsel %vm518, %v653, 0.0
        %669 = vadd.xlane.f32.xlu0 %v668
        %v670 = vpop.xlane.xlu0 %669
        %v671 = vsel %vm518, %v655, 0.0
        %672 = vadd.xlane.f32.xlu0 %v671
        %v673 = vpop.xlane.xlu0 %672
        %v674 = vsel %vm518, %v657, 0.0
        %675 = vadd.xlane.f32.xlu0 %v674
        %v676 = vpop.xlane.xlu0 %675
        %v677 = vsel %vm518, %v659, 0.0
        %678 = vadd.xlane.f32.xlu0 %v677
        %v679 = vpop.xlane.xlu0 %678
        %v680 = vsel %vm518, %v661, 0.0
        %681 = vadd.xlane.f32.xlu0 %v680
        %v682 = vpop.xlane.xlu0 %681
        %v683 = vsel %vm518, %v663, 0.0
        %684 = vadd.xlane.f32.xlu0 %v683
        %v685 = vpop.xlane.xlu0 %684
        %v686 = vsel %vm518, %v665, 0.0
        %687 = vadd.xlane.f32.xlu0 %v686
        %v688 = vpop.xlane.xlu0 %687
        %v689 = vsel %vm518, %v667, 0.0
        %690 = vadd.xlane.f32.xlu0 %v689
        %v691 = vpop.xlane.xlu0 %690
        %v692 = vrcp.pop %v670
        %v693 = vrcp.pop %v673
        %v694 = vrcp.pop %v676
        %v695 = vrcp.pop %v679
        %v696 = vrcp.pop %v682
        %v697 = vrcp.pop %v685
        %v698 = vrcp.pop %v688
        %v699 = vrcp.pop %v691
        %v700 = vmul.f32 %v653, %v692
        %v701 = vmul.f32 %v655, %v693
        %v702 = vmul.f32 %v657, %v694
        %v703 = vmul.f32 %v659, %v695
        %v704 = vmul.f32 %v661, %v696
        %v705 = vmul.f32 %v663, %v697
        %v706 = vmul.f32 %v665, %v698
        %v707 = vmul.f32 %v667, %v699
        %v708 = vpack.c.bf16 %v700, %v700
        %v709 = vpack.c.bf16 %v701, %v701
        %v710 = vpack.c.bf16 %v702, %v702
        %v711 = vpack.c.bf16 %v703, %v703
        %v712 = vpack.c.bf16 %v704, %v704
        %v713 = vpack.c.bf16 %v705, %v705
        %v714 = vpack.c.bf16 %v706, %v706
        %v715 = vpack.c.bf16 %v707, %v707
        %v718 = vunpack.c.l.b16 %v708
        %v719 = vunpack.c.l.b16 %v709
        %v720 = vpack.c.b16 %v719, %v718
        %v723 = vunpack.c.l.b16 %v503
        %v724 = vunpack.c.l.b16 %v504
        %v725 = vpack.c.b16 %v724, %v723
        %v728 = vsel %vm518, %v720, 0
        %730 = vmatpush.bf16.msra.mxu0 0
        %731 = vmatpush.bf16.msra.mxu0 0
        %732 = vmatpush.bf16.msra.mxu0 0
        %733 = vmatpush.bf16.msra.mxu0 0
        %734 = vmatpush.bf16.msra.mxu0 0
        %735 = vmatpush.bf16.msra.mxu0 0
        %736 = vmatpush.bf16.msra.mxu0 0
        %737 = vmatpush.bf16.msra.mxu0 %v725
        %738 = vmatmul.bf16.gmra.mxu0 %v728
        %v739 = vpop.f32.mrf.mxu0
        %v740 = vadd.f32 0.0, %v739
        %v741 = vpop.f32.mrf.mxu0
        %v742 = vadd.f32 0.0, %v741
        %743 = vdwg.mxu0
        %v746 = vunpack.c.l.b16 %v710
        %v747 = vunpack.c.l.b16 %v711
        %v748 = vpack.c.b16 %v747, %v746
        %v751 = vunpack.c.l.b16 %v505
        %v752 = vunpack.c.l.b16 %v506
        %v753 = vpack.c.b16 %v752, %v751
        %v756 = vsel %vm518, %v748, 0
        %758 = vmatpush.bf16.msra.mxu0 0
        %759 = vmatpush.bf16.msra.mxu0 0
        %760 = vmatpush.bf16.msra.mxu0 0
        %761 = vmatpush.bf16.msra.mxu0 0
        %762 = vmatpush.bf16.msra.mxu0 0
        %763 = vmatpush.bf16.msra.mxu0 0
        %764 = vmatpush.bf16.msra.mxu0 0
        %765 = vmatpush.bf16.msra.mxu0 %v753
        %766 = vmatmul.bf16.gmra.mxu0 %v756
        %v767 = vpop.f32.mrf.mxu0
        %v768 = vadd.f32 0.0, %v767
        %v769 = vpop.f32.mrf.mxu0
        %v770 = vadd.f32 0.0, %v769
        %771 = vdwg.mxu0
        %v774 = vunpack.c.l.b16 %v712
        %v775 = vunpack.c.l.b16 %v713
        %v776 = vpack.c.b16 %v775, %v774
        %v779 = vunpack.c.l.b16 %v507
        %v780 = vunpack.c.l.b16 %v508
        %v781 = vpack.c.b16 %v780, %v779
        %v784 = vsel %vm518, %v776, 0
        %786 = vmatpush.bf16.msra.mxu0 0
        %787 = vmatpush.bf16.msra.mxu0 0
        %788 = vmatpush.bf16.msra.mxu0 0
        %789 = vmatpush.bf16.msra.mxu0 0
        %790 = vmatpush.bf16.msra.mxu0 0
        %791 = vmatpush.bf16.msra.mxu0 0
        %792 = vmatpush.bf16.msra.mxu0 0
        %793 = vmatpush.bf16.msra.mxu0 %v781
        %794 = vmatmul.bf16.gmra.mxu0 %v784
        %v795 = vpop.f32.mrf.mxu0
        %v796 = vadd.f32 0.0, %v795
        %v797 = vpop.f32.mrf.mxu0
        %v798 = vadd.f32 0.0, %v797
        %799 = vdwg.mxu0
        %v802 = vunpack.c.l.b16 %v714
        %v803 = vunpack.c.l.b16 %v715
        %v804 = vpack.c.b16 %v803, %v802
        %v807 = vunpack.c.l.b16 %v509
        %v808 = vunpack.c.l.b16 %v510
        %v809 = vpack.c.b16 %v808, %v807
        %v812 = vsel %vm518, %v804, 0
        %814 = vmatpush.bf16.msra.mxu0 0
        %815 = vmatpush.bf16.msra.mxu0 0
        %816 = vmatpush.bf16.msra.mxu0 0
        %817 = vmatpush.bf16.msra.mxu0 0
        %818 = vmatpush.bf16.msra.mxu0 0
        %819 = vmatpush.bf16.msra.mxu0 0
        %820 = vmatpush.bf16.msra.mxu0 0
        %821 = vmatpush.bf16.msra.mxu0 %v809
        %822 = vmatmul.bf16.gmra.mxu0 %v812
        %v823 = vpop.f32.mrf.mxu0
        %v824 = vadd.f32 0.0, %v823
        %v825 = vpop.f32.mrf.mxu0
        %v826 = vadd.f32 0.0, %v825
        %827 = vdwg.mxu0
        %828 = vrot.lane.b32.xlu0 %v515, 112
        %v829 = vpop.permute.xlu0 %828
        %830 = vrot.lane.b32.xlu0 %v515, 48
        %v831 = vpop.permute.xlu0 %830
        %v833 = vsel %vm518, %v829, 0
        %v836 = vsel %vm518, %v831, 0
        %838 = vmatpush.bf16.xpose.msra.mxu0 0
        %839 = vmatpush.bf16.xpose.msra.mxu0 0
        %840 = vmatpush.bf16.xpose.msra.mxu0 0
        %841 = vmatpush.bf16.xpose.msra.mxu0 0
        %842 = vmatpush.bf16.xpose.msra.mxu0 0
        %843 = vmatpush.bf16.xpose.msra.mxu0 0
        %844 = vmatpush.bf16.xpose.msra.mxu0 0
        %845 = vmatpush.bf16.xpose.msra.mxu0 %v836
        %846 = vmatmul.bf16.gmra.mxu0 %v833
        %v847 = vpop.f32.mrf.mxu0
        %v848 = vadd.f32 0.0, %v847
        %v849 = vpop.f32.mrf.mxu0
        %v850 = vadd.f32 0.0, %v849
        %851 = vdwg.mxu0
        %852 = vrot.lane.b32.xlu0 %v543, 112
        %v853 = vpop.permute.xlu0 %852
        %854 = vrot.lane.b32.xlu0 %v543, 48
        %v855 = vpop.permute.xlu0 %854
        %v857 = vsel %vm518, %v853, 0
        %v860 = vsel %vm518, %v855, 0
        %862 = vmatpush.bf16.xpose.msra.mxu0 0
        %863 = vmatpush.bf16.xpose.msra.mxu0 0
        %864 = vmatpush.bf16.xpose.msra.mxu0 0
        %865 = vmatpush.bf16.xpose.msra.mxu0 0
        %866 = vmatpush.bf16.xpose.msra.mxu0 0
        %867 = vmatpush.bf16.xpose.msra.mxu0 0
        %868 = vmatpush.bf16.xpose.msra.mxu0 0
        %869 = vmatpush.bf16.xpose.msra.mxu0 %v860
        %870 = vmatmul.bf16.gmra.mxu0 %v857
        %v871 = vpop.f32.mrf.mxu0
        %v872 = vadd.f32 0.0, %v871
        %v873 = vpop.f32.mrf.mxu0
        %v874 = vadd.f32 0.0, %v873
        %875 = vdwg.mxu0
        %876 = vrot.lane.b32.xlu0 %v570, 112
        %v877 = vpop.permute.xlu0 %876
        %878 = vrot.lane.b32.xlu0 %v570, 48
        %v879 = vpop.permute.xlu0 %878
        %v881 = vsel %vm518, %v877, 0
        %v884 = vsel %vm518, %v879, 0
        %886 = vmatpush.bf16.xpose.msra.mxu0 0
        %887 = vmatpush.bf16.xpose.msra.mxu0 0
        %888 = vmatpush.bf16.xpose.msra.mxu0 0
        %889 = vmatpush.bf16.xpose.msra.mxu0 0
        %890 = vmatpush.bf16.xpose.msra.mxu0 0
        %891 = vmatpush.bf16.xpose.msra.mxu0 0
        %892 = vmatpush.bf16.xpose.msra.mxu0 0
        %893 = vmatpush.bf16.xpose.msra.mxu0 %v884
        %894 = vmatmul.bf16.gmra.mxu0 %v881
        %v895 = vpop.f32.mrf.mxu0
        %v896 = vadd.f32 0.0, %v895
        %v897 = vpop.f32.mrf.mxu0
        %v898 = vadd.f32 0.0, %v897
        %899 = vdwg.mxu0
        %900 = vrot.lane.b32.xlu0 %v597, 112
        %v901 = vpop.permute.xlu0 %900
        %902 = vrot.lane.b32.xlu0 %v597, 48
        %v903 = vpop.permute.xlu0 %902
        %v905 = vsel %vm518, %v901, 0
        %v908 = vsel %vm518, %v903, 0
        %910 = vmatpush.bf16.xpose.msra.mxu0 0
        %911 = vmatpush.bf16.xpose.msra.mxu0 0
        %912 = vmatpush.bf16.xpose.msra.mxu0 0
        %913 = vmatpush.bf16.xpose.msra.mxu0 0
        %914 = vmatpush.bf16.xpose.msra.mxu0 0
        %915 = vmatpush.bf16.xpose.msra.mxu0 0
        %916 = vmatpush.bf16.xpose.msra.mxu0 0
        %917 = vmatpush.bf16.xpose.msra.mxu0 %v908
        %918 = vmatmul.bf16.gmra.mxu0 %v905
        %v919 = vpop.f32.mrf.mxu0
        %v920 = vadd.f32 0.0, %v919
        %v921 = vpop.f32.mrf.mxu0
        %v922 = vadd.f32 0.0, %v921
        %923 = vdwg.mxu0
        %v924 = vsel %vm518, %v848, -inf
        %925 = vmax.xlane.f32.xlu0 %v924
        %v926 = vpop.xlane.xlu0 %925
        %v927 = vsel %vm518, %v850, -inf
        %928 = vmax.xlane.f32.xlu0 %v927
        %v929 = vpop.xlane.xlu0 %928
        %v930 = vsel %vm518, %v872, -inf
        %931 = vmax.xlane.f32.xlu0 %v930
        %v932 = vpop.xlane.xlu0 %931
        %v933 = vsel %vm518, %v874, -inf
        %934 = vmax.xlane.f32.xlu0 %v933
        %v935 = vpop.xlane.xlu0 %934
        %v936 = vsel %vm518, %v896, -inf
        %937 = vmax.xlane.f32.xlu0 %v936
        %v938 = vpop.xlane.xlu0 %937
        %v939 = vsel %vm518, %v898, -inf
        %940 = vmax.xlane.f32.xlu0 %v939
        %v941 = vpop.xlane.xlu0 %940
        %v942 = vsel %vm518, %v920, -inf
        %943 = vmax.xlane.f32.xlu0 %v942
        %v944 = vpop.xlane.xlu0 %943
        %v945 = vsel %vm518, %v922, -inf
        %946 = vmax.xlane.f32.xlu0 %v945
        %v947 = vpop.xlane.xlu0 %946
        %v948 = vsub.f32 %v848, %v926
        %v949 = vsub.f32 %v850, %v929
        %v950 = vsub.f32 %v872, %v932
        %v951 = vsub.f32 %v874, %v935
        %v952 = vsub.f32 %v896, %v938
        %v953 = vsub.f32 %v898, %v941
        %v954 = vsub.f32 %v920, %v944
        %v955 = vsub.f32 %v922, %v947
        %v956 = vmul.f32 %v948, 1.442695
        %v957 = vpow.pop %v956
        %v958 = vmul.f32 %v949, 1.442695
        %v959 = vpow.pop %v958
        %v960 = vmul.f32 %v950, 1.442695
        %v961 = vpow.pop %v960
        %v962 = vmul.f32 %v951, 1.442695
        %v963 = vpow.pop %v962
        %v964 = vmul.f32 %v952, 1.442695
        %v965 = vpow.pop %v964
        %v966 = vmul.f32 %v953, 1.442695
        %v967 = vpow.pop %v966
        %v968 = vmul.f32 %v954, 1.442695
        %v969 = vpow.pop %v968
        %v970 = vmul.f32 %v955, 1.442695
        %v971 = vpow.pop %v970
        %v972 = vsel %vm518, %v957, 0.0
        %973 = vadd.xlane.f32.xlu0 %v972
        %v974 = vpop.xlane.xlu0 %973
        %v975 = vsel %vm518, %v959, 0.0
        %976 = vadd.xlane.f32.xlu0 %v975
        %v977 = vpop.xlane.xlu0 %976
        %v978 = vsel %vm518, %v961, 0.0
        %979 = vadd.xlane.f32.xlu0 %v978
        %v980 = vpop.xlane.xlu0 %979
        %v981 = vsel %vm518, %v963, 0.0
        %982 = vadd.xlane.f32.xlu0 %v981
        %v983 = vpop.xlane.xlu0 %982
        %v984 = vsel %vm518, %v965, 0.0
        %985 = vadd.xlane.f32.xlu0 %v984
        %v986 = vpop.xlane.xlu0 %985
        %v987 = vsel %vm518, %v967, 0.0
        %988 = vadd.xlane.f32.xlu0 %v987
        %v989 = vpop.xlane.xlu0 %988
        %v990 = vsel %vm518, %v969, 0.0
        %991 = vadd.xlane.f32.xlu0 %v990
        %v992 = vpop.xlane.xlu0 %991
        %v993 = vsel %vm518, %v971, 0.0
        %994 = vadd.xlane.f32.xlu0 %v993
        %v995 = vpop.xlane.xlu0 %994
        %v996 = vrcp.pop %v974
        %v997 = vrcp.pop %v977
        %v998 = vrcp.pop %v980
        %v999 = vrcp.pop %v983
        %v1000 = vrcp.pop %v986
        %v1001 = vrcp.pop %v989
        %v1002 = vrcp.pop %v992
        %v1003 = vrcp.pop %v995
        %v1004 = vmul.f32 %v957, %v996
        %v1005 = vmul.f32 %v959, %v997
        %v1006 = vmul.f32 %v961, %v998
        %v1007 = vmul.f32 %v963, %v999
        %v1008 = vmul.f32 %v965, %v1000
        %v1009 = vmul.f32 %v967, %v1001
        %v1010 = vmul.f32 %v969, %v1002
        %v1011 = vmul.f32 %v971, %v1003
        %v1012 = vpack.c.bf16 %v1004, %v1004
        %v1013 = vpack.c.bf16 %v1005, %v1005
        %v1014 = vpack.c.bf16 %v1006, %v1006
        %v1015 = vpack.c.bf16 %v1007, %v1007
        %v1016 = vpack.c.bf16 %v1008, %v1008
        %v1017 = vpack.c.bf16 %v1009, %v1009
        %v1018 = vpack.c.bf16 %v1010, %v1010
        %v1019 = vpack.c.bf16 %v1011, %v1011
        %v1022 = vunpack.c.l.b16 %v1012
        %v1023 = vunpack.c.l.b16 %v1013
        %v1024 = vpack.c.b16 %v1023, %v1022
        %1025 = vrot.lane.b32.xlu0 %v725, 112
        %v1026 = vpop.permute.xlu0 %1025
        %v1029 = vsel %vm518, %v1024, 0
        %1031 = vmatpush.bf16.msra.mxu0 0
        %1032 = vmatpush.bf16.msra.mxu0 0
        %1033 = vmatpush.bf16.msra.mxu0 0
        %1034 = vmatpush.bf16.msra.mxu0 0
        %1035 = vmatpush.bf16.msra.mxu0 0
        %1036 = vmatpush.bf16.msra.mxu0 0
        %1037 = vmatpush.bf16.msra.mxu0 0
        %1038 = vmatpush.bf16.msra.mxu0 %v1026
        %1039 = vmatmul.bf16.gmra.mxu0 %v1029
        %v1040 = vpop.f32.mrf.mxu0
        %v1041 = vadd.f32 0.0, %v1040
        %v1042 = vpop.f32.mrf.mxu0
        %v1043 = vadd.f32 0.0, %v1042
        %1044 = vdwg.mxu0
        %v1047 = vunpack.c.l.b16 %v1014
        %v1048 = vunpack.c.l.b16 %v1015
        %v1049 = vpack.c.b16 %v1048, %v1047
        %1050 = vrot.lane.b32.xlu0 %v753, 112
        %v1051 = vpop.permute.xlu0 %1050
        %v1054 = vsel %vm518, %v1049, 0
        %1056 = vmatpush.bf16.msra.mxu0 0
        %1057 = vmatpush.bf16.msra.mxu0 0
        %1058 = vmatpush.bf16.msra.mxu0 0
        %1059 = vmatpush.bf16.msra.mxu0 0
        %1060 = vmatpush.bf16.msra.mxu0 0
        %1061 = vmatpush.bf16.msra.mxu0 0
        %1062 = vmatpush.bf16.msra.mxu0 0
        %1063 = vmatpush.bf16.msra.mxu0 %v1051
        %1064 = vmatmul.bf16.gmra.mxu0 %v1054
        %v1065 = vpop.f32.mrf.mxu0
        %v1066 = vadd.f32 0.0, %v1065
        %v1067 = vpop.f32.mrf.mxu0
        %v1068 = vadd.f32 0.0, %v1067
        %1069 = vdwg.mxu0
        %v1072 = vunpack.c.l.b16 %v1016
        %v1073 = vunpack.c.l.b16 %v1017
        %v1074 = vpack.c.b16 %v1073, %v1072
        %1075 = vrot.lane.b32.xlu0 %v781, 112
        %v1076 = vpop.permute.xlu0 %1075
        %v1079 = vsel %vm518, %v1074, 0
        %1081 = vmatpush.bf16.msra.mxu0 0
        %1082 = vmatpush.bf16.msra.mxu0 0
        %1083 = vmatpush.bf16.msra.mxu0 0
        %1084 = vmatpush.bf16.msra.mxu0 0
        %1085 = vmatpush.bf16.msra.mxu0 0
        %1086 = vmatpush.bf16.msra.mxu0 0
        %1087 = vmatpush.bf16.msra.mxu0 0
        %1088 = vmatpush.bf16.msra.mxu0 %v1076
        %1089 = vmatmul.bf16.gmra.mxu0 %v1079
        %v1090 = vpop.f32.mrf.mxu0
        %v1091 = vadd.f32 0.0, %v1090
        %v1092 = vpop.f32.mrf.mxu0
        %v1093 = vadd.f32 0.0, %v1092
        %1094 = vdwg.mxu0
        %v1097 = vunpack.c.l.b16 %v1018
        %v1098 = vunpack.c.l.b16 %v1019
        %v1099 = vpack.c.b16 %v1098, %v1097
        %1100 = vrot.lane.b32.xlu0 %v809, 112
        %v1101 = vpop.permute.xlu0 %1100
        %v1104 = vsel %vm518, %v1099, 0
        %1106 = vmatpush.bf16.msra.mxu0 0
        %1107 = vmatpush.bf16.msra.mxu0 0
        %1108 = vmatpush.bf16.msra.mxu0 0
        %1109 = vmatpush.bf16.msra.mxu0 0
        %1110 = vmatpush.bf16.msra.mxu0 0
        %1111 = vmatpush.bf16.msra.mxu0 0
        %1112 = vmatpush.bf16.msra.mxu0 0
        %1113 = vmatpush.bf16.msra.mxu0 %v1101
        %1114 = vmatmul.bf16.gmra.mxu0 %v1104
        %v1115 = vpop.f32.mrf.mxu0
        %v1116 = vadd.f32 0.0, %v1115
        %v1117 = vpop.f32.mrf.mxu0
        %v1118 = vadd.f32 0.0, %v1117
        %1119 = vdwg.mxu0
        %1120 = vrot.lane.b32.xlu0 %v515, 96
        %v1121 = vpop.permute.xlu0 %1120
        %1122 = vrot.lane.b32.xlu0 %v515, 32
        %v1123 = vpop.permute.xlu0 %1122
        %v1125 = vsel %vm518, %v1121, 0
        %v1128 = vsel %vm518, %v1123, 0
        %1130 = vmatpush.bf16.xpose.msra.mxu0 0
        %1131 = vmatpush.bf16.xpose.msra.mxu0 0
        %1132 = vmatpush.bf16.xpose.msra.mxu0 0
        %1133 = vmatpush.bf16.xpose.msra.mxu0 0
        %1134 = vmatpush.bf16.xpose.msra.mxu0 0
        %1135 = vmatpush.bf16.xpose.msra.mxu0 0
        %1136 = vmatpush.bf16.xpose.msra.mxu0 0
        %1137 = vmatpush.bf16.xpose.msra.mxu0 %v1128
        %1138 = vmatmul.bf16.gmra.mxu0 %v1125
        %v1139 = vpop.f32.mrf.mxu0
        %v1140 = vadd.f32 0.0, %v1139
        %v1141 = vpop.f32.mrf.mxu0
        %v1142 = vadd.f32 0.0, %v1141
        %1143 = vdwg.mxu0
        %1144 = vrot.lane.b32.xlu0 %v543, 96
        %v1145 = vpop.permute.xlu0 %1144
        %1146 = vrot.lane.b32.xlu0 %v543, 32
        %v1147 = vpop.permute.xlu0 %1146
        %v1149 = vsel %vm518, %v1145, 0
        %v1152 = vsel %vm518, %v1147, 0
        %1154 = vmatpush.bf16.xpose.msra.mxu0 0
        %1155 = vmatpush.bf16.xpose.msra.mxu0 0
        %1156 = vmatpush.bf16.xpose.msra.mxu0 0
        %1157 = vmatpush.bf16.xpose.msra.mxu0 0
        %1158 = vmatpush.bf16.xpose.msra.mxu0 0
        %1159 = vmatpush.bf16.xpose.msra.mxu0 0
        %1160 = vmatpush.bf16.xpose.msra.mxu0 0
        %1161 = vmatpush.bf16.xpose.msra.mxu0 %v1152
        %1162 = vmatmul.bf16.gmra.mxu0 %v1149
        %v1163 = vpop.f32.mrf.mxu0
        %v1164 = vadd.f32 0.0, %v1163
        %v1165 = vpop.f32.mrf.mxu0
        %v1166 = vadd.f32 0.0, %v1165
        %1167 = vdwg.mxu0
        %1168 = vrot.lane.b32.xlu0 %v570, 96
        %v1169 = vpop.permute.xlu0 %1168
        %1170 = vrot.lane.b32.xlu0 %v570, 32
        %v1171 = vpop.permute.xlu0 %1170
        %v1173 = vsel %vm518, %v1169, 0
        %v1176 = vsel %vm518, %v1171, 0
        %1178 = vmatpush.bf16.xpose.msra.mxu0 0
        %1179 = vmatpush.bf16.xpose.msra.mxu0 0
        %1180 = vmatpush.bf16.xpose.msra.mxu0 0
        %1181 = vmatpush.bf16.xpose.msra.mxu0 0
        %1182 = vmatpush.bf16.xpose.msra.mxu0 0
        %1183 = vmatpush.bf16.xpose.msra.mxu0 0
        %1184 = vmatpush.bf16.xpose.msra.mxu0 0
        %1185 = vmatpush.bf16.xpose.msra.mxu0 %v1176
        %1186 = vmatmul.bf16.gmra.mxu0 %v1173
        %v1187 = vpop.f32.mrf.mxu0
        %v1188 = vadd.f32 0.0, %v1187
        %v1189 = vpop.f32.mrf.mxu0
        %v1190 = vadd.f32 0.0, %v1189
        %1191 = vdwg.mxu0
        %1192 = vrot.lane.b32.xlu0 %v597, 96
        %v1193 = vpop.permute.xlu0 %1192
        %1194 = vrot.lane.b32.xlu0 %v597, 32
        %v1195 = vpop.permute.xlu0 %1194
        %v1197 = vsel %vm518, %v1193, 0
        %v1200 = vsel %vm518, %v1195, 0
        %1202 = vmatpush.bf16.xpose.msra.mxu0 0
        %1203 = vmatpush.bf16.xpose.msra.mxu0 0
        %1204 = vmatpush.bf16.xpose.msra.mxu0 0
        %1205 = vmatpush.bf16.xpose.msra.mxu0 0
        %1206 = vmatpush.bf16.xpose.msra.mxu0 0
        %1207 = vmatpush.bf16.xpose.msra.mxu0 0
        %1208 = vmatpush.bf16.xpose.msra.mxu0 0
        %1209 = vmatpush.bf16.xpose.msra.mxu0 %v1200
        %1210 = vmatmul.bf16.gmra.mxu0 %v1197
        %v1211 = vpop.f32.mrf.mxu0
        %v1212 = vadd.f32 0.0, %v1211
        %v1213 = vpop.f32.mrf.mxu0
        %v1214 = vadd.f32 0.0, %v1213
        %1215 = vdwg.mxu0
        %v1216 = vsel %vm518, %v1140, -inf
        %1217 = vmax.xlane.f32.xlu0 %v1216
        %v1218 = vpop.xlane.xlu0 %1217
        %v1219 = vsel %vm518, %v1142, -inf
        %1220 = vmax.xlane.f32.xlu0 %v1219
        %v1221 = vpop.xlane.xlu0 %1220
        %v1222 = vsel %vm518, %v1164, -inf
        %1223 = vmax.xlane.f32.xlu0 %v1222
        %v1224 = vpop.xlane.xlu0 %1223
        %v1225 = vsel %vm518, %v1166, -inf
        %1226 = vmax.xlane.f32.xlu0 %v1225
        %v1227 = vpop.xlane.xlu0 %1226
        %v1228 = vsel %vm518, %v1188, -inf
        %1229 = vmax.xlane.f32.xlu0 %v1228
        %v1230 = vpop.xlane.xlu0 %1229
        %v1231 = vsel %vm518, %v1190, -inf
        %1232 = vmax.xlane.f32.xlu0 %v1231
        %v1233 = vpop.xlane.xlu0 %1232
        %v1234 = vsel %vm518, %v1212, -inf
        %1235 = vmax.xlane.f32.xlu0 %v1234
        %v1236 = vpop.xlane.xlu0 %1235
        %v1237 = vsel %vm518, %v1214, -inf
        %1238 = vmax.xlane.f32.xlu0 %v1237
        %v1239 = vpop.xlane.xlu0 %1238
        %v1240 = vsub.f32 %v1140, %v1218
        %v1241 = vsub.f32 %v1142, %v1221
        %v1242 = vsub.f32 %v1164, %v1224
        %v1243 = vsub.f32 %v1166, %v1227
        %v1244 = vsub.f32 %v1188, %v1230
        %v1245 = vsub.f32 %v1190, %v1233
        %v1246 = vsub.f32 %v1212, %v1236
        %v1247 = vsub.f32 %v1214, %v1239
        %v1248 = vmul.f32 %v1240, 1.442695
        %v1249 = vpow.pop %v1248
        %v1250 = vmul.f32 %v1241, 1.442695
        %v1251 = vpow.pop %v1250
        %v1252 = vmul.f32 %v1242, 1.442695
        %v1253 = vpow.pop %v1252
        %v1254 = vmul.f32 %v1243, 1.442695
        %v1255 = vpow.pop %v1254
        %v1256 = vmul.f32 %v1244, 1.442695
        %v1257 = vpow.pop %v1256
        %v1258 = vmul.f32 %v1245, 1.442695
        %v1259 = vpow.pop %v1258
        %v1260 = vmul.f32 %v1246, 1.442695
        %v1261 = vpow.pop %v1260
        %v1262 = vmul.f32 %v1247, 1.442695
        %v1263 = vpow.pop %v1262
        %v1264 = vsel %vm518, %v1249, 0.0
        %1265 = vadd.xlane.f32.xlu0 %v1264
        %v1266 = vpop.xlane.xlu0 %1265
        %v1267 = vsel %vm518, %v1251, 0.0
        %1268 = vadd.xlane.f32.xlu0 %v1267
        %v1269 = vpop.xlane.xlu0 %1268
        %v1270 = vsel %vm518, %v1253, 0.0
        %1271 = vadd.xlane.f32.xlu0 %v1270
        %v1272 = vpop.xlane.xlu0 %1271
        %v1273 = vsel %vm518, %v1255, 0.0
        %1274 = vadd.xlane.f32.xlu0 %v1273
        %v1275 = vpop.xlane.xlu0 %1274
        %v1276 = vsel %vm518, %v1257, 0.0
        %1277 = vadd.xlane.f32.xlu0 %v1276
        %v1278 = vpop.xlane.xlu0 %1277
        %v1279 = vsel %vm518, %v1259, 0.0
        %1280 = vadd.xlane.f32.xlu0 %v1279
        %v1281 = vpop.xlane.xlu0 %1280
        %v1282 = vsel %vm518, %v1261, 0.0
        %1283 = vadd.xlane.f32.xlu0 %v1282
        %v1284 = vpop.xlane.xlu0 %1283
        %v1285 = vsel %vm518, %v1263, 0.0
        %1286 = vadd.xlane.f32.xlu0 %v1285
        %v1287 = vpop.xlane.xlu0 %1286
        %v1288 = vrcp.pop %v1266
        %v1289 = vrcp.pop %v1269
        %v1290 = vrcp.pop %v1272
        %v1291 = vrcp.pop %v1275
        %v1292 = vrcp.pop %v1278
        %v1293 = vrcp.pop %v1281
        %v1294 = vrcp.pop %v1284
        %v1295 = vrcp.pop %v1287
        %v1296 = vmul.f32 %v1249, %v1288
        %v1297 = vmul.f32 %v1251, %v1289
        %v1298 = vmul.f32 %v1253, %v1290
        %v1299 = vmul.f32 %v1255, %v1291
        %v1300 = vmul.f32 %v1257, %v1292
        %v1301 = vmul.f32 %v1259, %v1293
        %v1302 = vmul.f32 %v1261, %v1294
        %v1303 = vmul.f32 %v1263, %v1295
        %v1304 = vpack.c.bf16 %v1296, %v1296
        %v1305 = vpack.c.bf16 %v1297, %v1297
        %v1306 = vpack.c.bf16 %v1298, %v1298
        %v1307 = vpack.c.bf16 %v1299, %v1299
        %v1308 = vpack.c.bf16 %v1300, %v1300
        %v1309 = vpack.c.bf16 %v1301, %v1301
        %v1310 = vpack.c.bf16 %v1302, %v1302
        %v1311 = vpack.c.bf16 %v1303, %v1303
        %v1314 = vunpack.c.l.b16 %v1304
        %v1315 = vunpack.c.l.b16 %v1305
        %v1316 = vpack.c.b16 %v1315, %v1314
        %1317 = vrot.lane.b32.xlu0 %v725, 96
        %v1318 = vpop.permute.xlu0 %1317
        %v1321 = vsel %vm518, %v1316, 0
        %1323 = vmatpush.bf16.msra.mxu0 0
        %1324 = vmatpush.bf16.msra.mxu0 0
        %1325 = vmatpush.bf16.msra.mxu0 0
        %1326 = vmatpush.bf16.msra.mxu0 0
        %1327 = vmatpush.bf16.msra.mxu0 0
        %1328 = vmatpush.bf16.msra.mxu0 0
        %1329 = vmatpush.bf16.msra.mxu0 0
        %1330 = vmatpush.bf16.msra.mxu0 %v1318
        %1331 = vmatmul.bf16.gmra.mxu0 %v1321
        %v1332 = vpop.f32.mrf.mxu0
        %v1333 = vadd.f32 0.0, %v1332
        %v1334 = vpop.f32.mrf.mxu0
        %v1335 = vadd.f32 0.0, %v1334
        %1336 = vdwg.mxu0
        %v1339 = vunpack.c.l.b16 %v1306
        %v1340 = vunpack.c.l.b16 %v1307
        %v1341 = vpack.c.b16 %v1340, %v1339
        %1342 = vrot.lane.b32.xlu0 %v753, 96
        %v1343 = vpop.permute.xlu0 %1342
        %v1346 = vsel %vm518, %v1341, 0
        %1348 = vmatpush.bf16.msra.mxu0 0
        %1349 = vmatpush.bf16.msra.mxu0 0
        %1350 = vmatpush.bf16.msra.mxu0 0
        %1351 = vmatpush.bf16.msra.mxu0 0
        %1352 = vmatpush.bf16.msra.mxu0 0
        %1353 = vmatpush.bf16.msra.mxu0 0
        %1354 = vmatpush.bf16.msra.mxu0 0
        %1355 = vmatpush.bf16.msra.mxu0 %v1343
        %1356 = vmatmul.bf16.gmra.mxu0 %v1346
        %v1357 = vpop.f32.mrf.mxu0
        %v1358 = vadd.f32 0.0, %v1357
        %v1359 = vpop.f32.mrf.mxu0
        %v1360 = vadd.f32 0.0, %v1359
        %1361 = vdwg.mxu0
        %v1364 = vunpack.c.l.b16 %v1308
        %v1365 = vunpack.c.l.b16 %v1309
        %v1366 = vpack.c.b16 %v1365, %v1364
        %1367 = vrot.lane.b32.xlu0 %v781, 96
        %v1368 = vpop.permute.xlu0 %1367
        %v1371 = vsel %vm518, %v1366, 0
        %1373 = vmatpush.bf16.msra.mxu0 0
        %1374 = vmatpush.bf16.msra.mxu0 0
        %1375 = vmatpush.bf16.msra.mxu0 0
        %1376 = vmatpush.bf16.msra.mxu0 0
        %1377 = vmatpush.bf16.msra.mxu0 0
        %1378 = vmatpush.bf16.msra.mxu0 0
        %1379 = vmatpush.bf16.msra.mxu0 0
        %1380 = vmatpush.bf16.msra.mxu0 %v1368
        %1381 = vmatmul.bf16.gmra.mxu0 %v1371
        %v1382 = vpop.f32.mrf.mxu0
        %v1383 = vadd.f32 0.0, %v1382
        %v1384 = vpop.f32.mrf.mxu0
        %v1385 = vadd.f32 0.0, %v1384
        %1386 = vdwg.mxu0
        %v1389 = vunpack.c.l.b16 %v1310
        %v1390 = vunpack.c.l.b16 %v1311
        %v1391 = vpack.c.b16 %v1390, %v1389
        %1392 = vrot.lane.b32.xlu0 %v809, 96
        %v1393 = vpop.permute.xlu0 %1392
        %v1396 = vsel %vm518, %v1391, 0
        %1398 = vmatpush.bf16.msra.mxu0 0
        %1399 = vmatpush.bf16.msra.mxu0 0
        %1400 = vmatpush.bf16.msra.mxu0 0
        %1401 = vmatpush.bf16.msra.mxu0 0
        %1402 = vmatpush.bf16.msra.mxu0 0
        %1403 = vmatpush.bf16.msra.mxu0 0
        %1404 = vmatpush.bf16.msra.mxu0 0
        %1405 = vmatpush.bf16.msra.mxu0 %v1393
        %1406 = vmatmul.bf16.gmra.mxu0 %v1396
        %v1407 = vpop.f32.mrf.mxu0
        %v1408 = vadd.f32 0.0, %v1407
        %v1409 = vpop.f32.mrf.mxu0
        %v1410 = vadd.f32 0.0, %v1409
        %1411 = vdwg.mxu0
        %1412 = vrot.lane.b32.xlu0 %v515, 80
        %v1413 = vpop.permute.xlu0 %1412
        %1414 = vrot.lane.b32.xlu0 %v515, 16
        %v1415 = vpop.permute.xlu0 %1414
        %v1417 = vsel %vm518, %v1413, 0
        %v1420 = vsel %vm518, %v1415, 0
        %1422 = vmatpush.bf16.xpose.msra.mxu0 0
        %1423 = vmatpush.bf16.xpose.msra.mxu0 0
        %1424 = vmatpush.bf16.xpose.msra.mxu0 0
        %1425 = vmatpush.bf16.xpose.msra.mxu0 0
        %1426 = vmatpush.bf16.xpose.msra.mxu0 0
        %1427 = vmatpush.bf16.xpose.msra.mxu0 0
        %1428 = vmatpush.bf16.xpose.msra.mxu0 0
        %1429 = vmatpush.bf16.xpose.msra.mxu0 %v1420
        %1430 = vmatmul.bf16.gmra.mxu0 %v1417
        %v1431 = vpop.f32.mrf.mxu0
        %v1432 = vadd.f32 0.0, %v1431
        %v1433 = vpop.f32.mrf.mxu0
        %v1434 = vadd.f32 0.0, %v1433
        %1435 = vdwg.mxu0
        %1436 = vrot.lane.b32.xlu0 %v543, 80
        %v1437 = vpop.permute.xlu0 %1436
        %1438 = vrot.lane.b32.xlu0 %v543, 16
        %v1439 = vpop.permute.xlu0 %1438
        %v1441 = vsel %vm518, %v1437, 0
        %v1444 = vsel %vm518, %v1439, 0
        %1446 = vmatpush.bf16.xpose.msra.mxu0 0
        %1447 = vmatpush.bf16.xpose.msra.mxu0 0
        %1448 = vmatpush.bf16.xpose.msra.mxu0 0
        %1449 = vmatpush.bf16.xpose.msra.mxu0 0
        %1450 = vmatpush.bf16.xpose.msra.mxu0 0
        %1451 = vmatpush.bf16.xpose.msra.mxu0 0
        %1452 = vmatpush.bf16.xpose.msra.mxu0 0
        %1453 = vmatpush.bf16.xpose.msra.mxu0 %v1444
        %1454 = vmatmul.bf16.gmra.mxu0 %v1441
        %v1455 = vpop.f32.mrf.mxu0
        %v1456 = vadd.f32 0.0, %v1455
        %v1457 = vpop.f32.mrf.mxu0
        %v1458 = vadd.f32 0.0, %v1457
        %1459 = vdwg.mxu0
        %1460 = vrot.lane.b32.xlu0 %v570, 80
        %v1461 = vpop.permute.xlu0 %1460
        %1462 = vrot.lane.b32.xlu0 %v570, 16
        %v1463 = vpop.permute.xlu0 %1462
        %v1465 = vsel %vm518, %v1461, 0
        %v1468 = vsel %vm518, %v1463, 0
        %1470 = vmatpush.bf16.xpose.msra.mxu0 0
        %1471 = vmatpush.bf16.xpose.msra.mxu0 0
        %1472 = vmatpush.bf16.xpose.msra.mxu0 0
        %1473 = vmatpush.bf16.xpose.msra.mxu0 0
        %1474 = vmatpush.bf16.xpose.msra.mxu0 0
        %1475 = vmatpush.bf16.xpose.msra.mxu0 0
        %1476 = vmatpush.bf16.xpose.msra.mxu0 0
        %1477 = vmatpush.bf16.xpose.msra.mxu0 %v1468
        %1478 = vmatmul.bf16.gmra.mxu0 %v1465
        %v1479 = vpop.f32.mrf.mxu0
        %v1480 = vadd.f32 0.0, %v1479
        %v1481 = vpop.f32.mrf.mxu0
        %v1482 = vadd.f32 0.0, %v1481
        %1483 = vdwg.mxu0
        %1484 = vrot.lane.b32.xlu0 %v597, 80
        %v1485 = vpop.permute.xlu0 %1484
        %1486 = vrot.lane.b32.xlu0 %v597, 16
        %v1487 = vpop.permute.xlu0 %1486
        %v1489 = vsel %vm518, %v1485, 0
        %v1492 = vsel %vm518, %v1487, 0
        %1494 = vmatpush.bf16.xpose.msra.mxu0 0
        %1495 = vmatpush.bf16.xpose.msra.mxu0 0
        %1496 = vmatpush.bf16.xpose.msra.mxu0 0
        %1497 = vmatpush.bf16.xpose.msra.mxu0 0
        %1498 = vmatpush.bf16.xpose.msra.mxu0 0
        %1499 = vmatpush.bf16.xpose.msra.mxu0 0
        %1500 = vmatpush.bf16.xpose.msra.mxu0 0
        %1501 = vmatpush.bf16.xpose.msra.mxu0 %v1492
        %1502 = vmatmul.bf16.gmra.mxu0 %v1489
        %v1503 = vpop.f32.mrf.mxu0
        %v1504 = vadd.f32 0.0, %v1503
        %v1505 = vpop.f32.mrf.mxu0
        %v1506 = vadd.f32 0.0, %v1505
        %1507 = vdwg.mxu0
        %v1508 = vsel %vm518, %v1432, -inf
        %1509 = vmax.xlane.f32.xlu0 %v1508
        %v1510 = vpop.xlane.xlu0 %1509
        %v1511 = vsel %vm518, %v1434, -inf
        %1512 = vmax.xlane.f32.xlu0 %v1511
        %v1513 = vpop.xlane.xlu0 %1512
        %v1514 = vsel %vm518, %v1456, -inf
        %1515 = vmax.xlane.f32.xlu0 %v1514
        %v1516 = vpop.xlane.xlu0 %1515
        %v1517 = vsel %vm518, %v1458, -inf
        %1518 = vmax.xlane.f32.xlu0 %v1517
        %v1519 = vpop.xlane.xlu0 %1518
        %v1520 = vsel %vm518, %v1480, -inf
        %1521 = vmax.xlane.f32.xlu0 %v1520
        %v1522 = vpop.xlane.xlu0 %1521
        %v1523 = vsel %vm518, %v1482, -inf
        %1524 = vmax.xlane.f32.xlu0 %v1523
        %v1525 = vpop.xlane.xlu0 %1524
        %v1526 = vsel %vm518, %v1504, -inf
        %1527 = vmax.xlane.f32.xlu0 %v1526
        %v1528 = vpop.xlane.xlu0 %1527
        %v1529 = vsel %vm518, %v1506, -inf
        %1530 = vmax.xlane.f32.xlu0 %v1529
        %v1531 = vpop.xlane.xlu0 %1530
        %v1532 = vsub.f32 %v1432, %v1510
        %v1533 = vsub.f32 %v1434, %v1513
        %v1534 = vsub.f32 %v1456, %v1516
        %v1535 = vsub.f32 %v1458, %v1519
        %v1536 = vsub.f32 %v1480, %v1522
        %v1537 = vsub.f32 %v1482, %v1525
        %v1538 = vsub.f32 %v1504, %v1528
        %v1539 = vsub.f32 %v1506, %v1531
        %v1540 = vmul.f32 %v1532, 1.442695
        %v1541 = vpow.pop %v1540
        %v1542 = vmul.f32 %v1533, 1.442695
        %v1543 = vpow.pop %v1542
        %v1544 = vmul.f32 %v1534, 1.442695
        %v1545 = vpow.pop %v1544
        %v1546 = vmul.f32 %v1535, 1.442695
        %v1547 = vpow.pop %v1546
        %v1548 = vmul.f32 %v1536, 1.442695
        %v1549 = vpow.pop %v1548
        %v1550 = vmul.f32 %v1537, 1.442695
        %v1551 = vpow.pop %v1550
        %v1552 = vmul.f32 %v1538, 1.442695
        %v1553 = vpow.pop %v1552
        %v1554 = vmul.f32 %v1539, 1.442695
        %v1555 = vpow.pop %v1554
        %v1556 = vsel %vm518, %v1541, 0.0
        %1557 = vadd.xlane.f32.xlu0 %v1556
        %v1558 = vpop.xlane.xlu0 %1557
        %v1559 = vsel %vm518, %v1543, 0.0
        %1560 = vadd.xlane.f32.xlu0 %v1559
        %v1561 = vpop.xlane.xlu0 %1560
        %v1562 = vsel %vm518, %v1545, 0.0
        %1563 = vadd.xlane.f32.xlu0 %v1562
        %v1564 = vpop.xlane.xlu0 %1563
        %v1565 = vsel %vm518, %v1547, 0.0
        %1566 = vadd.xlane.f32.xlu0 %v1565
        %v1567 = vpop.xlane.xlu0 %1566
        %v1568 = vsel %vm518, %v1549, 0.0
        %1569 = vadd.xlane.f32.xlu0 %v1568
        %v1570 = vpop.xlane.xlu0 %1569
        %v1571 = vsel %vm518, %v1551, 0.0
        %1572 = vadd.xlane.f32.xlu0 %v1571
        %v1573 = vpop.xlane.xlu0 %1572
        %v1574 = vsel %vm518, %v1553, 0.0
        %1575 = vadd.xlane.f32.xlu0 %v1574
        %v1576 = vpop.xlane.xlu0 %1575
        %v1577 = vsel %vm518, %v1555, 0.0
        %1578 = vadd.xlane.f32.xlu0 %v1577
        %v1579 = vpop.xlane.xlu0 %1578
        %v1580 = vrcp.pop %v1558
        %v1581 = vrcp.pop %v1561
        %v1582 = vrcp.pop %v1564
        %v1583 = vrcp.pop %v1567
        %v1584 = vrcp.pop %v1570
        %v1585 = vrcp.pop %v1573
        %v1586 = vrcp.pop %v1576
        %v1587 = vrcp.pop %v1579
        %v1588 = vmul.f32 %v1541, %v1580
        %v1589 = vmul.f32 %v1543, %v1581
        %v1590 = vmul.f32 %v1545, %v1582
        %v1591 = vmul.f32 %v1547, %v1583
        %v1592 = vmul.f32 %v1549, %v1584
        %v1593 = vmul.f32 %v1551, %v1585
        %v1594 = vmul.f32 %v1553, %v1586
        %v1595 = vmul.f32 %v1555, %v1587
        %v1596 = vpack.c.bf16 %v1588, %v1588
        %v1597 = vpack.c.bf16 %v1589, %v1589
        %v1598 = vpack.c.bf16 %v1590, %v1590
        %v1599 = vpack.c.bf16 %v1591, %v1591
        %v1600 = vpack.c.bf16 %v1592, %v1592
        %v1601 = vpack.c.bf16 %v1593, %v1593
        %v1602 = vpack.c.bf16 %v1594, %v1594
        %v1603 = vpack.c.bf16 %v1595, %v1595
        %v1606 = vunpack.c.l.b16 %v1596
        %v1607 = vunpack.c.l.b16 %v1597
        %v1608 = vpack.c.b16 %v1607, %v1606
        %1609 = vrot.lane.b32.xlu0 %v725, 80
        %v1610 = vpop.permute.xlu0 %1609
        %v1613 = vsel %vm518, %v1608, 0
        %1615 = vmatpush.bf16.msra.mxu0 0
        %1616 = vmatpush.bf16.msra.mxu0 0
        %1617 = vmatpush.bf16.msra.mxu0 0
        %1618 = vmatpush.bf16.msra.mxu0 0
        %1619 = vmatpush.bf16.msra.mxu0 0
        %1620 = vmatpush.bf16.msra.mxu0 0
        %1621 = vmatpush.bf16.msra.mxu0 0
        %1622 = vmatpush.bf16.msra.mxu0 %v1610
        %1623 = vmatmul.bf16.gmra.mxu0 %v1613
        %v1624 = vpop.f32.mrf.mxu0
        %v1625 = vadd.f32 0.0, %v1624
        %v1626 = vpop.f32.mrf.mxu0
        %v1627 = vadd.f32 0.0, %v1626
        %1628 = vdwg.mxu0
        %v1631 = vunpack.c.l.b16 %v1598
        %v1632 = vunpack.c.l.b16 %v1599
        %v1633 = vpack.c.b16 %v1632, %v1631
        %1634 = vrot.lane.b32.xlu0 %v753, 80
        %v1635 = vpop.permute.xlu0 %1634
        %v1638 = vsel %vm518, %v1633, 0
        %1640 = vmatpush.bf16.msra.mxu0 0
        %1641 = vmatpush.bf16.msra.mxu0 0
        %1642 = vmatpush.bf16.msra.mxu0 0
        %1643 = vmatpush.bf16.msra.mxu0 0
        %1644 = vmatpush.bf16.msra.mxu0 0
        %1645 = vmatpush.bf16.msra.mxu0 0
        %1646 = vmatpush.bf16.msra.mxu0 0
        %1647 = vmatpush.bf16.msra.mxu0 %v1635
        %1648 = vmatmul.bf16.gmra.mxu0 %v1638
        %v1649 = vpop.f32.mrf.mxu0
        %v1650 = vadd.f32 0.0, %v1649
        %v1651 = vpop.f32.mrf.mxu0
        %v1652 = vadd.f32 0.0, %v1651
        %1653 = vdwg.mxu0
        %v1656 = vunpack.c.l.b16 %v1600
        %v1657 = vunpack.c.l.b16 %v1601
        %v1658 = vpack.c.b16 %v1657, %v1656
        %1659 = vrot.lane.b32.xlu0 %v781, 80
        %v1660 = vpop.permute.xlu0 %1659
        %v1663 = vsel %vm518, %v1658, 0
        %1665 = vmatpush.bf16.msra.mxu0 0
        %1666 = vmatpush.bf16.msra.mxu0 0
        %1667 = vmatpush.bf16.msra.mxu0 0
        %1668 = vmatpush.bf16.msra.mxu0 0
        %1669 = vmatpush.bf16.msra.mxu0 0
        %1670 = vmatpush.bf16.msra.mxu0 0
        %1671 = vmatpush.bf16.msra.mxu0 0
        %1672 = vmatpush.bf16.msra.mxu0 %v1660
        %1673 = vmatmul.bf16.gmra.mxu0 %v1663
        %v1674 = vpop.f32.mrf.mxu0
        %v1675 = vadd.f32 0.0, %v1674
        %v1676 = vpop.f32.mrf.mxu0
        %v1677 = vadd.f32 0.0, %v1676
        %1678 = vdwg.mxu0
        %v1681 = vunpack.c.l.b16 %v1602
        %v1682 = vunpack.c.l.b16 %v1603
        %v1683 = vpack.c.b16 %v1682, %v1681
        %1684 = vrot.lane.b32.xlu0 %v809, 80
        %v1685 = vpop.permute.xlu0 %1684
        %v1688 = vsel %vm518, %v1683, 0
        %1690 = vmatpush.bf16.msra.mxu0 0
        %1691 = vmatpush.bf16.msra.mxu0 0
        %1692 = vmatpush.bf16.msra.mxu0 0
        %1693 = vmatpush.bf16.msra.mxu0 0
        %1694 = vmatpush.bf16.msra.mxu0 0
        %1695 = vmatpush.bf16.msra.mxu0 0
        %1696 = vmatpush.bf16.msra.mxu0 0
        %1697 = vmatpush.bf16.msra.mxu0 %v1685
        %1698 = vmatmul.bf16.gmra.mxu0 %v1688
        %v1699 = vpop.f32.mrf.mxu0
        %v1700 = vadd.f32 0.0, %v1699
        %v1701 = vpop.f32.mrf.mxu0
        %v1702 = vadd.f32 0.0, %v1701
        %1703 = vdwg.mxu0
        %1712 = vrot.lane.b32.xlu0 %v1041, 16
        %v1713 = vpop.permute.xlu0 %1712
        %1714 = vrot.lane.b32.xlu0 %v1043, 16
        %v1715 = vpop.permute.xlu0 %1714
        %1716 = vrot.lane.b32.xlu0 %v1066, 16
        %v1717 = vpop.permute.xlu0 %1716
        %1718 = vrot.lane.b32.xlu0 %v1068, 16
        %v1719 = vpop.permute.xlu0 %1718
        %1720 = vrot.lane.b32.xlu0 %v1091, 16
        %v1721 = vpop.permute.xlu0 %1720
        %1722 = vrot.lane.b32.xlu0 %v1093, 16
        %v1723 = vpop.permute.xlu0 %1722
        %1724 = vrot.lane.b32.xlu0 %v1116, 16
        %v1725 = vpop.permute.xlu0 %1724
        %1726 = vrot.lane.b32.xlu0 %v1118, 16
        %v1727 = vpop.permute.xlu0 %1726
        %1744 = vrot.lane.b32.xlu0 %v1333, 32
        %v1745 = vpop.permute.xlu0 %1744
        %1746 = vrot.lane.b32.xlu0 %v1335, 32
        %v1747 = vpop.permute.xlu0 %1746
        %1748 = vrot.lane.b32.xlu0 %v1358, 32
        %v1749 = vpop.permute.xlu0 %1748
        %1750 = vrot.lane.b32.xlu0 %v1360, 32
        %v1751 = vpop.permute.xlu0 %1750
        %1752 = vrot.lane.b32.xlu0 %v1383, 32
        %v1753 = vpop.permute.xlu0 %1752
        %1754 = vrot.lane.b32.xlu0 %v1385, 32
        %v1755 = vpop.permute.xlu0 %1754
        %1756 = vrot.lane.b32.xlu0 %v1408, 32
        %v1757 = vpop.permute.xlu0 %1756
        %1758 = vrot.lane.b32.xlu0 %v1410, 32
        %v1759 = vpop.permute.xlu0 %1758
        %1776 = vrot.lane.b32.xlu0 %v1625, 48
        %v1777 = vpop.permute.xlu0 %1776
        %1778 = vrot.lane.b32.xlu0 %v1627, 48
        %v1779 = vpop.permute.xlu0 %1778
        %1780 = vrot.lane.b32.xlu0 %v1650, 48
        %v1781 = vpop.permute.xlu0 %1780
        %1782 = vrot.lane.b32.xlu0 %v1652, 48
        %v1783 = vpop.permute.xlu0 %1782
        %1784 = vrot.lane.b32.xlu0 %v1675, 48
        %v1785 = vpop.permute.xlu0 %1784
        %1786 = vrot.lane.b32.xlu0 %v1677, 48
        %v1787 = vpop.permute.xlu0 %1786
        %1788 = vrot.lane.b32.xlu0 %v1700, 48
        %v1789 = vpop.permute.xlu0 %1788
        %1790 = vrot.lane.b32.xlu0 %v1702, 48
        %v1791 = vpop.permute.xlu0 %1790
        %v1800 = vsel %vm518, %v740, %v1713
        %v1801 = vsel %vm518, %v742, %v1715
        %v1802 = vsel %vm518, %v768, %v1717
        %v1803 = vsel %vm518, %v770, %v1719
        %v1804 = vsel %vm518, %v796, %v1721
        %v1805 = vsel %vm518, %v798, %v1723
        %v1806 = vsel %vm518, %v824, %v1725
        %v1807 = vsel %vm518, %v826, %v1727
        %vm1808 = vcmask 261120
        %v1809 = vsel %vm1808, %v1800, %v1745
        %v1810 = vsel %vm1808, %v1801, %v1747
        %v1811 = vsel %vm1808, %v1802, %v1749
        %v1812 = vsel %vm1808, %v1803, %v1751
        %v1813 = vsel %vm1808, %v1804, %v1753
        %v1814 = vsel %vm1808, %v1805, %v1755
        %v1815 = vsel %vm1808, %v1806, %v1757
        %v1816 = vsel %vm1808, %v1807, %v1759
        %vm1817 = vcmask 392192
        %v1818 = vsel %vm1817, %v1809, %v1777
        %v1819 = vsel %vm1817, %v1810, %v1779
        %v1820 = vsel %vm1817, %v1811, %v1781
        %v1821 = vsel %vm1817, %v1812, %v1783
        %v1822 = vsel %vm1817, %v1813, %v1785
        %v1823 = vsel %vm1817, %v1814, %v1787
        %v1824 = vsel %vm1817, %v1815, %v1789
        %v1825 = vsel %vm1817, %v1816, %v1791
        %v1826 = vpack.c.bf16 %v1819, %v1818
        %v1827 = vpack.c.bf16 %v1821, %v1820
        %v1828 = vpack.c.bf16 %v1823, %v1822
        %v1829 = vpack.c.bf16 %v1825, %v1824
        %v1830 = vld [vmem:[#allocation7] sm:$0xf]
        %v1831 = vld [vmem:[#allocation7 + $0x4] sm:$0xf]
        %v1832 = vld [vmem:[#allocation7 + $0x8] sm:$0xf]
        %v1833 = vld [vmem:[#allocation7 + $0xc] sm:$0xf]
        %v1834 = vld [vmem:[#allocation7 + $0x10] sm:$0xf]
        %v1835 = vld [vmem:[#allocation7 + $0x14] sm:$0xf]
        %v1836 = vld [vmem:[#allocation7 + $0x18] sm:$0xf]
        %v1837 = vld [vmem:[#allocation7 + $0x1c] sm:$0xf]
        %v1838 = vperm.slane %v365, 0
        %v1847 = vunpack.c.l.b16 %v1830
        %v1848 = vunpack.c.l.b16 %v1831
        %v1849 = vunpack.c.l.b16 %v1832
        %v1850 = vunpack.c.l.b16 %v1833
        %v1851 = vunpack.c.l.b16 %v1834
        %v1852 = vunpack.c.l.b16 %v1835
        %v1853 = vunpack.c.l.b16 %v1836
        %v1854 = vunpack.c.l.b16 %v1837
        %v1855 = vpack.c.b16 %v1848, %v1847
        %v1856 = vpack.c.b16 %v1850, %v1849
        %v1857 = vpack.c.b16 %v1852, %v1851
        %v1858 = vpack.c.b16 %v1854, %v1853
        %v1864 = vsel %vm424, %v1826, 0
        %v1867 = vsel %vm424, %v1827, 0
        %v1870 = vsel %vm424, %v1828, 0
        %v1873 = vsel %vm424, %v1829, 0
        %1875 = vmatpush.bf16.msra.mxu0 0
        %1876 = vmatpush.bf16.msra.mxu0 0
        %1877 = vmatpush.bf16.msra.mxu0 0
        %1878 = vmatpush.bf16.msra.mxu0 0
        %1879 = vmatpush.bf16.msra.mxu0 %v1858
        %1880 = vmatpush.bf16.msra.mxu0 %v1857
        %1881 = vmatpush.bf16.msra.mxu0 %v1856
        %1882 = vmatpush.bf16.msra.mxu0 %v1855
        %1883 = vmatmul.bf16.gmra.mxu0 %v1864
        %v1884 = vpop.f32.mrf.mxu0
        %v1885 = vadd.f32 %v1838, %v1884
        %v1886 = vpop.f32.mrf.mxu0
        %v1887 = vadd.f32 %v1838, %v1886
        %1888 = vmatmul.bf16.gmra.mxu0 %v1867
        %v1889 = vpop.f32.mrf.mxu0
        %v1890 = vadd.f32 %v1838, %v1889
        %v1891 = vpop.f32.mrf.mxu0
        %v1892 = vadd.f32 %v1838, %v1891
        %1893 = vmatmul.bf16.gmra.mxu0 %v1870
        %v1894 = vpop.f32.mrf.mxu0
        %v1895 = vadd.f32 %v1838, %v1894
        %v1896 = vpop.f32.mrf.mxu0
        %v1897 = vadd.f32 %v1838, %v1896
        %1898 = vmatmul.bf16.gmra.mxu0 %v1873
        %v1899 = vpop.f32.mrf.mxu0
        %v1900 = vadd.f32 %v1838, %v1899
        %v1901 = vpop.f32.mrf.mxu0
        %v1902 = vadd.f32 %v1838, %v1901
        %1903 = vdwg.mxu0
        %v1904 = vadd.f32 %v357, %v1885
        %v1905 = vadd.f32 %v358, %v1887
        %v1906 = vadd.f32 %v359, %v1890
        %v1907 = vadd.f32 %v360, %v1892
        %v1908 = vadd.f32 %v361, %v1895
        %v1909 = vadd.f32 %v362, %v1897
        %v1910 = vadd.f32 %v363, %v1900
        %v1911 = vadd.f32 %v364, %v1902
        %v1912 = vsel %vm424, %v1904, 0.0
        %1913 = vadd.xlane.f32.xlu0 %v1912
        %v1914 = vpop.xlane.xlu0 %1913
        %v1915 = vsel %vm424, %v1905, 0.0
        %1916 = vadd.xlane.f32.xlu0 %v1915
        %v1917 = vpop.xlane.xlu0 %1916
        %v1918 = vsel %vm424, %v1906, 0.0
        %1919 = vadd.xlane.f32.xlu0 %v1918
        %v1920 = vpop.xlane.xlu0 %1919
        %v1921 = vsel %vm424, %v1907, 0.0
        %1922 = vadd.xlane.f32.xlu0 %v1921
        %v1923 = vpop.xlane.xlu0 %1922
        %v1924 = vsel %vm424, %v1908, 0.0
        %1925 = vadd.xlane.f32.xlu0 %v1924
        %v1926 = vpop.xlane.xlu0 %1925
        %v1927 = vsel %vm424, %v1909, 0.0
        %1928 = vadd.xlane.f32.xlu0 %v1927
        %v1929 = vpop.xlane.xlu0 %1928
        %v1930 = vsel %vm424, %v1910, 0.0
        %1931 = vadd.xlane.f32.xlu0 %v1930
        %v1932 = vpop.xlane.xlu0 %1931
        %v1933 = vsel %vm424, %v1911, 0.0
        %1934 = vadd.xlane.f32.xlu0 %v1933
        %v1935 = vpop.xlane.xlu0 %1934
        %v1936 = vrcp.pop 64.0
        %v1937 = vmul.f32 64.0, %v1936
        %v1938 = vsub.f32 1.0, %v1937
        %v1939 = vmul.f32 %v1936, %v1938
        %v1940 = vadd.f32 %v1936, %v1939
        %vm1941 = vweird.f32 %v1936
        %v1942 = vsel %vm1941, %v1936, %v1940
        %v1943 = vmul.f32 %v1914, %v1942
        %v1944 = vmul.f32 %v1917, %v1942
        %v1945 = vmul.f32 %v1920, %v1942
        %v1946 = vmul.f32 %v1923, %v1942
        %v1947 = vmul.f32 %v1926, %v1942
        %v1948 = vmul.f32 %v1929, %v1942
        %v1949 = vmul.f32 %v1932, %v1942
        %v1950 = vmul.f32 %v1935, %v1942
        %v1951 = vsub.f32 %v1904, %v1943
        %v1952 = vsub.f32 %v1905, %v1944
        %v1953 = vsub.f32 %v1906, %v1945
        %v1954 = vsub.f32 %v1907, %v1946
        %v1955 = vsub.f32 %v1908, %v1947
        %v1956 = vsub.f32 %v1909, %v1948
        %v1957 = vsub.f32 %v1910, %v1949
        %v1958 = vsub.f32 %v1911, %v1950
        %v1959 = vmul.f32 %v1951, %v1951
        %v1960 = vmul.f32 %v1952, %v1952
        %v1961 = vmul.f32 %v1953, %v1953
        %v1962 = vmul.f32 %v1954, %v1954
        %v1963 = vmul.f32 %v1955, %v1955
        %v1964 = vmul.f32 %v1956, %v1956
        %v1965 = vmul.f32 %v1957, %v1957
        %v1966 = vmul.f32 %v1958, %v1958
        %v1967 = vsel %vm424, %v1959, 0.0
        %1968 = vadd.xlane.f32.xlu0 %v1967
        %v1969 = vpop.xlane.xlu0 %1968
        %v1970 = vsel %vm424, %v1960, 0.0
        %1971 = vadd.xlane.f32.xlu0 %v1970
        %v1972 = vpop.xlane.xlu0 %1971
        %v1973 = vsel %vm424, %v1961, 0.0
        %1974 = vadd.xlane.f32.xlu0 %v1973
        %v1975 = vpop.xlane.xlu0 %1974
        %v1976 = vsel %vm424, %v1962, 0.0
        %1977 = vadd.xlane.f32.xlu0 %v1976
        %v1978 = vpop.xlane.xlu0 %1977
        %v1979 = vsel %vm424, %v1963, 0.0
        %1980 = vadd.xlane.f32.xlu0 %v1979
        %v1981 = vpop.xlane.xlu0 %1980
        %v1982 = vsel %vm424, %v1964, 0.0
        %1983 = vadd.xlane.f32.xlu0 %v1982
        %v1984 = vpop.xlane.xlu0 %1983
        %v1985 = vsel %vm424, %v1965, 0.0
        %1986 = vadd.xlane.f32.xlu0 %v1985
        %v1987 = vpop.xlane.xlu0 %1986
        %v1988 = vsel %vm424, %v1966, 0.0
        %1989 = vadd.xlane.f32.xlu0 %v1988
        %v1990 = vpop.xlane.xlu0 %1989
        %v1991 = vmul.f32 %v1969, %v1942
        %v1992 = vmul.f32 %v1972, %v1942
        %v1993 = vmul.f32 %v1975, %v1942
        %v1994 = vmul.f32 %v1978, %v1942
        %v1995 = vmul.f32 %v1981, %v1942
        %v1996 = vmul.f32 %v1984, %v1942
        %v1997 = vmul.f32 %v1987, %v1942
        %v1998 = vmul.f32 %v1990, %v1942
        %v1999 = vadd.f32 %v1991, 1e-05
        %v2000 = vadd.f32 %v1992, 1e-05
        %v2001 = vadd.f32 %v1993, 1e-05
        %v2002 = vadd.f32 %v1994, 1e-05
        %v2003 = vadd.f32 %v1995, 1e-05
        %v2004 = vadd.f32 %v1996, 1e-05
        %v2005 = vadd.f32 %v1997, 1e-05
        %v2006 = vadd.f32 %v1998, 1e-05
        %v2007 = vrsqrt.pop %v1999
        %v2008 = vmul.f32 %v2007, %v1999
        %v2009 = vmul.f32 %v2008, %v2007
        %v2010 = vmul.f32 0.5, %v2009
        %v2011 = vsub.f32 1.5, %v2010
        %v2012 = vmul.f32 %v2007, %v2011
        %vm2013 = vweird.f32 %v1999
        %vm2014 = vweird.f32 %v2007
        %vm2015 = vmor %vm2013, %vm2014
        %v2016 = vsel %vm2015, %v2007, %v2012
        %v2017 = vrsqrt.pop %v2000
        %v2018 = vmul.f32 %v2017, %v2000
        %v2019 = vmul.f32 %v2018, %v2017
        %v2020 = vmul.f32 0.5, %v2019
        %v2021 = vsub.f32 1.5, %v2020
        %v2022 = vmul.f32 %v2017, %v2021
        %vm2023 = vweird.f32 %v2000
        %vm2024 = vweird.f32 %v2017
        %vm2025 = vmor %vm2023, %vm2024
        %v2026 = vsel %vm2025, %v2017, %v2022
        %v2027 = vrsqrt.pop %v2001
        %v2028 = vmul.f32 %v2027, %v2001
        %v2029 = vmul.f32 %v2028, %v2027
        %v2030 = vmul.f32 0.5, %v2029
        %v2031 = vsub.f32 1.5, %v2030
        %v2032 = vmul.f32 %v2027, %v2031
        %vm2033 = vweird.f32 %v2001
        %vm2034 = vweird.f32 %v2027
        %vm2035 = vmor %vm2033, %vm2034
        %v2036 = vsel %vm2035, %v2027, %v2032
        %v2037 = vrsqrt.pop %v2002
        %v2038 = vmul.f32 %v2037, %v2002
        %v2039 = vmul.f32 %v2038, %v2037
        %v2040 = vmul.f32 0.5, %v2039
        %v2041 = vsub.f32 1.5, %v2040
        %v2042 = vmul.f32 %v2037, %v2041
        %vm2043 = vweird.f32 %v2002
        %vm2044 = vweird.f32 %v2037
        %vm2045 = vmor %vm2043, %vm2044
        %v2046 = vsel %vm2045, %v2037, %v2042
        %v2047 = vrsqrt.pop %v2003
        %v2048 = vmul.f32 %v2047, %v2003
        %v2049 = vmul.f32 %v2048, %v2047
        %v2050 = vmul.f32 0.5, %v2049
        %v2051 = vsub.f32 1.5, %v2050
        %v2052 = vmul.f32 %v2047, %v2051
        %vm2053 = vweird.f32 %v2003
        %vm2054 = vweird.f32 %v2047
        %vm2055 = vmor %vm2053, %vm2054
        %v2056 = vsel %vm2055, %v2047, %v2052
        %v2057 = vrsqrt.pop %v2004
        %v2058 = vmul.f32 %v2057, %v2004
        %v2059 = vmul.f32 %v2058, %v2057
        %v2060 = vmul.f32 0.5, %v2059
        %v2061 = vsub.f32 1.5, %v2060
        %v2062 = vmul.f32 %v2057, %v2061
        %vm2063 = vweird.f32 %v2004
        %vm2064 = vweird.f32 %v2057
        %vm2065 = vmor %vm2063, %vm2064
        %v2066 = vsel %vm2065, %v2057, %v2062
        %v2067 = vrsqrt.pop %v2005
        %v2068 = vmul.f32 %v2067, %v2005
        %v2069 = vmul.f32 %v2068, %v2067
        %v2070 = vmul.f32 0.5, %v2069
        %v2071 = vsub.f32 1.5, %v2070
        %v2072 = vmul.f32 %v2067, %v2071
        %vm2073 = vweird.f32 %v2005
        %vm2074 = vweird.f32 %v2067
        %vm2075 = vmor %vm2073, %vm2074
        %v2076 = vsel %vm2075, %v2067, %v2072
        %v2077 = vrsqrt.pop %v2006
        %v2078 = vmul.f32 %v2077, %v2006
        %v2079 = vmul.f32 %v2078, %v2077
        %v2080 = vmul.f32 0.5, %v2079
        %v2081 = vsub.f32 1.5, %v2080
        %v2082 = vmul.f32 %v2077, %v2081
        %vm2083 = vweird.f32 %v2006
        %vm2084 = vweird.f32 %v2077
        %vm2085 = vmor %vm2083, %vm2084
        %v2086 = vsel %vm2085, %v2077, %v2082
        %v2087 = vmul.f32 %v1951, %v2016
        %v2088 = vmul.f32 %v1952, %v2026
        %v2089 = vmul.f32 %v1953, %v2036
        %v2090 = vmul.f32 %v1954, %v2046
        %v2091 = vmul.f32 %v1955, %v2056
        %v2092 = vmul.f32 %v1956, %v2066
        %v2093 = vmul.f32 %v1957, %v2076
        %v2094 = vmul.f32 %v1958, %v2086
        %v2095 = vperm.slane %v366, 0
        %v2096 = vmul.f32 %v2087, %v2095
        %v2097 = vmul.f32 %v2088, %v2095
        %v2098 = vmul.f32 %v2089, %v2095
        %v2099 = vmul.f32 %v2090, %v2095
        %v2100 = vmul.f32 %v2091, %v2095
        %v2101 = vmul.f32 %v2092, %v2095
        %v2102 = vmul.f32 %v2093, %v2095
        %v2103 = vmul.f32 %v2094, %v2095
        %v2104 = vperm.slane %v367, 0
        %v2105 = vadd.f32 %v2096, %v2104
        %v2106 = vadd.f32 %v2097, %v2104
        %v2107 = vadd.f32 %v2098, %v2104
        %v2108 = vadd.f32 %v2099, %v2104
        %v2109 = vadd.f32 %v2100, %v2104
        %v2110 = vadd.f32 %v2101, %v2104
        %v2111 = vadd.f32 %v2102, %v2104
        %v2112 = vadd.f32 %v2103, %v2104
        %v2113 = vpack.c.bf16 %v2106, %v2105
        %v2114 = vpack.c.bf16 %v2108, %v2107
        %v2115 = vpack.c.bf16 %v2110, %v2109
        %v2116 = vpack.c.bf16 %v2112, %v2111
        %v2117 = vld [vmem:[#allocation8] sm:$0xf]
        %v2118 = vld [vmem:[#allocation8 + $0x4] sm:$0xf]
        %v2119 = vld [vmem:[#allocation8 + $0x8] sm:$0xf]
        %v2120 = vld [vmem:[#allocation8 + $0xc] sm:$0xf]
        %v2121 = vld [vmem:[#allocation8 + $0x10] sm:$0xf]
        %v2122 = vld [vmem:[#allocation8 + $0x14] sm:$0xf]
        %v2123 = vld [vmem:[#allocation8 + $0x18] sm:$0xf]
        %v2124 = vld [vmem:[#allocation8 + $0x1c] sm:$0xf]
        %v2125 = vperm.slane %v368, 0
        %v2134 = vunpack.c.l.b16 %v2117
        %v2135 = vunpack.c.l.b16 %v2118
        %v2136 = vunpack.c.l.b16 %v2119
        %v2137 = vunpack.c.l.b16 %v2120
        %v2138 = vunpack.c.l.b16 %v2121
        %v2139 = vunpack.c.l.b16 %v2122
        %v2140 = vunpack.c.l.b16 %v2123
        %v2141 = vunpack.c.l.b16 %v2124
        %v2142 = vpack.c.b16 %v2135, %v2134
        %v2143 = vpack.c.b16 %v2137, %v2136
        %v2144 = vpack.c.b16 %v2139, %v2138
        %v2145 = vpack.c.b16 %v2141, %v2140
        %v2151 = vsel %vm424, %v2113, 0
        %v2154 = vsel %vm424, %v2114, 0
        %v2157 = vsel %vm424, %v2115, 0
        %v2160 = vsel %vm424, %v2116, 0
        %2162 = vmatpush.bf16.msra.mxu0 0
        %2163 = vmatpush.bf16.msra.mxu0 0
        %2164 = vmatpush.bf16.msra.mxu0 0
        %2165 = vmatpush.bf16.msra.mxu0 0
        %2166 = vmatpush.bf16.msra.mxu0 %v2145
        %2167 = vmatpush.bf16.msra.mxu0 %v2144
        %2168 = vmatpush.bf16.msra.mxu0 %v2143
        %2169 = vmatpush.bf16.msra.mxu0 %v2142
        %2170 = vmatmul.bf16.gmra.mxu0 %v2151
        %v2171 = vpop.f32.mrf.mxu0
        %v2172 = vadd.f32 %v2125, %v2171
        %v2173 = vpop.f32.mrf.mxu0
        %v2174 = vadd.f32 %v2125, %v2173
        %2175 = vmatmul.bf16.gmra.mxu0 %v2154
        %v2176 = vpop.f32.mrf.mxu0
        %v2177 = vadd.f32 %v2125, %v2176
        %v2178 = vpop.f32.mrf.mxu0
        %v2179 = vadd.f32 %v2125, %v2178
        %2180 = vmatmul.bf16.gmra.mxu0 %v2157
        %v2181 = vpop.f32.mrf.mxu0
        %v2182 = vadd.f32 %v2125, %v2181
        %v2183 = vpop.f32.mrf.mxu0
        %v2184 = vadd.f32 %v2125, %v2183
        %2185 = vmatmul.bf16.gmra.mxu0 %v2160
        %v2186 = vpop.f32.mrf.mxu0
        %v2187 = vadd.f32 %v2125, %v2186
        %v2188 = vpop.f32.mrf.mxu0
        %v2189 = vadd.f32 %v2125, %v2188
        %2190 = vdwg.mxu0
        %v2191 = vmax.f32 %v2172, 0.0
        %v2192 = vmax.f32 %v2174, 0.0
        %v2193 = vmax.f32 %v2177, 0.0
        %v2194 = vmax.f32 %v2179, 0.0
        %v2195 = vmax.f32 %v2182, 0.0
        %v2196 = vmax.f32 %v2184, 0.0
        %v2197 = vmax.f32 %v2187, 0.0
        %v2198 = vmax.f32 %v2189, 0.0
        %v2199 = vpack.c.bf16 %v2192, %v2191
        %v2200 = vpack.c.bf16 %v2194, %v2193
        %v2201 = vpack.c.bf16 %v2196, %v2195
        %v2202 = vpack.c.bf16 %v2198, %v2197
        %v2203 = vld [vmem:[#allocation10] sm:$0xf]
        %v2204 = vld [vmem:[#allocation10 + $0x4] sm:$0xf]
        %v2205 = vld [vmem:[#allocation10 + $0x8] sm:$0xf]
        %v2206 = vld [vmem:[#allocation10 + $0xc] sm:$0xf]
        %v2207 = vld [vmem:[#allocation10 + $0x10] sm:$0xf]
        %v2208 = vld [vmem:[#allocation10 + $0x14] sm:$0xf]
        %v2209 = vld [vmem:[#allocation10 + $0x18] sm:$0xf]
        %v2210 = vld [vmem:[#allocation10 + $0x1c] sm:$0xf]
        %v2211 = vperm.slane %v369, 0
        %v2220 = vunpack.c.l.b16 %v2203
        %v2221 = vunpack.c.l.b16 %v2204
        %v2222 = vunpack.c.l.b16 %v2205
        %v2223 = vunpack.c.l.b16 %v2206
        %v2224 = vunpack.c.l.b16 %v2207
        %v2225 = vunpack.c.l.b16 %v2208
        %v2226 = vunpack.c.l.b16 %v2209
        %v2227 = vunpack.c.l.b16 %v2210
        %v2228 = vpack.c.b16 %v2221, %v2220
        %v2229 = vpack.c.b16 %v2223, %v2222
        %v2230 = vpack.c.b16 %v2225, %v2224
        %v2231 = vpack.c.b16 %v2227, %v2226
        %v2237 = vsel %vm424, %v2199, 0
        %v2240 = vsel %vm424, %v2200, 0
        %v2243 = vsel %vm424, %v2201, 0
        %v2246 = vsel %vm424, %v2202, 0
        %2248 = vmatpush.bf16.msra.mxu0 0
        %2249 = vmatpush.bf16.msra.mxu0 0
        %2250 = vmatpush.bf16.msra.mxu0 0
        %2251 = vmatpush.bf16.msra.mxu0 0
        %2252 = vmatpush.bf16.msra.mxu0 %v2231
        %2253 = vmatpush.bf16.msra.mxu0 %v2230
        %2254 = vmatpush.bf16.msra.mxu0 %v2229
        %2255 = vmatpush.bf16.msra.mxu0 %v2228
        %2256 = vmatmul.bf16.gmra.mxu0 %v2237
        %v2257 = vpop.f32.mrf.mxu0
        %v2258 = vadd.f32 %v2211, %v2257
        %v2259 = vpop.f32.mrf.mxu0
        %v2260 = vadd.f32 %v2211, %v2259
        %2261 = vmatmul.bf16.gmra.mxu0 %v2240
        %v2262 = vpop.f32.mrf.mxu0
        %v2263 = vadd.f32 %v2211, %v2262
        %v2264 = vpop.f32.mrf.mxu0
        %v2265 = vadd.f32 %v2211, %v2264
        %2266 = vmatmul.bf16.gmra.mxu0 %v2243
        %v2267 = vpop.f32.mrf.mxu0
        %v2268 = vadd.f32 %v2211, %v2267
        %v2269 = vpop.f32.mrf.mxu0
        %v2270 = vadd.f32 %v2211, %v2269
        %2271 = vmatmul.bf16.gmra.mxu0 %v2246
        %v2272 = vpop.f32.mrf.mxu0
        %v2273 = vadd.f32 %v2211, %v2272
        %v2274 = vpop.f32.mrf.mxu0
        %v2275 = vadd.f32 %v2211, %v2274
        %2276 = vdwg.mxu0
        %v2277 = vadd.f32 %v2258, %v2105
        %v2278 = vadd.f32 %v2260, %v2106
        %v2279 = vadd.f32 %v2263, %v2107
        %v2280 = vadd.f32 %v2265, %v2108
        %v2281 = vadd.f32 %v2268, %v2109
        %v2282 = vadd.f32 %v2270, %v2110
        %v2283 = vadd.f32 %v2273, %v2111
        %v2284 = vadd.f32 %v2275, %v2112
        %v2285 = vsel %vm424, %v2277, 0.0
        %2286 = vadd.xlane.f32.xlu0 %v2285
        %v2287 = vpop.xlane.xlu0 %2286
        %v2288 = vsel %vm424, %v2278, 0.0
        %2289 = vadd.xlane.f32.xlu0 %v2288
        %v2290 = vpop.xlane.xlu0 %2289
        %v2291 = vsel %vm424, %v2279, 0.0
        %2292 = vadd.xlane.f32.xlu0 %v2291
        %v2293 = vpop.xlane.xlu0 %2292
        %v2294 = vsel %vm424, %v2280, 0.0
        %2295 = vadd.xlane.f32.xlu0 %v2294
        %v2296 = vpop.xlane.xlu0 %2295
        %v2297 = vsel %vm424, %v2281, 0.0
        %2298 = vadd.xlane.f32.xlu0 %v2297
        %v2299 = vpop.xlane.xlu0 %2298
        %v2300 = vsel %vm424, %v2282, 0.0
        %2301 = vadd.xlane.f32.xlu0 %v2300
        %v2302 = vpop.xlane.xlu0 %2301
        %v2303 = vsel %vm424, %v2283, 0.0
        %2304 = vadd.xlane.f32.xlu0 %v2303
        %v2305 = vpop.xlane.xlu0 %2304
        %v2306 = vsel %vm424, %v2284, 0.0
        %2307 = vadd.xlane.f32.xlu0 %v2306
        %v2308 = vpop.xlane.xlu0 %2307
        %v2309 = vmul.f32 %v2287, %v1942
        %v2310 = vmul.f32 %v2290, %v1942
        %v2311 = vmul.f32 %v2293, %v1942
        %v2312 = vmul.f32 %v2296, %v1942
        %v2313 = vmul.f32 %v2299, %v1942
        %v2314 = vmul.f32 %v2302, %v1942
        %v2315 = vmul.f32 %v2305, %v1942
        %v2316 = vmul.f32 %v2308, %v1942
        %v2317 = vsub.f32 %v2277, %v2309
        %v2318 = vsub.f32 %v2278, %v2310
        %v2319 = vsub.f32 %v2279, %v2311
        %v2320 = vsub.f32 %v2280, %v2312
        %v2321 = vsub.f32 %v2281, %v2313
        %v2322 = vsub.f32 %v2282, %v2314
        %v2323 = vsub.f32 %v2283, %v2315
        %v2324 = vsub.f32 %v2284, %v2316
        %v2325 = vmul.f32 %v2317, %v2317
        %v2326 = vmul.f32 %v2318, %v2318
        %v2327 = vmul.f32 %v2319, %v2319
        %v2328 = vmul.f32 %v2320, %v2320
        %v2329 = vmul.f32 %v2321, %v2321
        %v2330 = vmul.f32 %v2322, %v2322
        %v2331 = vmul.f32 %v2323, %v2323
        %v2332 = vmul.f32 %v2324, %v2324
        %v2333 = vsel %vm424, %v2325, 0.0
        %2334 = vadd.xlane.f32.xlu0 %v2333
        %v2335 = vpop.xlane.xlu0 %2334
        %v2336 = vsel %vm424, %v2326, 0.0
        %2337 = vadd.xlane.f32.xlu0 %v2336
        %v2338 = vpop.xlane.xlu0 %2337
        %v2339 = vsel %vm424, %v2327, 0.0
        %2340 = vadd.xlane.f32.xlu0 %v2339
        %v2341 = vpop.xlane.xlu0 %2340
        %v2342 = vsel %vm424, %v2328, 0.0
        %2343 = vadd.xlane.f32.xlu0 %v2342
        %v2344 = vpop.xlane.xlu0 %2343
        %v2345 = vsel %vm424, %v2329, 0.0
        %2346 = vadd.xlane.f32.xlu0 %v2345
        %v2347 = vpop.xlane.xlu0 %2346
        %v2348 = vsel %vm424, %v2330, 0.0
        %2349 = vadd.xlane.f32.xlu0 %v2348
        %v2350 = vpop.xlane.xlu0 %2349
        %v2351 = vsel %vm424, %v2331, 0.0
        %2352 = vadd.xlane.f32.xlu0 %v2351
        %v2353 = vpop.xlane.xlu0 %2352
        %v2354 = vsel %vm424, %v2332, 0.0
        %2355 = vadd.xlane.f32.xlu0 %v2354
        %v2356 = vpop.xlane.xlu0 %2355
        %v2357 = vmul.f32 %v2335, %v1942
        %v2358 = vmul.f32 %v2338, %v1942
        %v2359 = vmul.f32 %v2341, %v1942
        %v2360 = vmul.f32 %v2344, %v1942
        %v2361 = vmul.f32 %v2347, %v1942
        %v2362 = vmul.f32 %v2350, %v1942
        %v2363 = vmul.f32 %v2353, %v1942
        %v2364 = vmul.f32 %v2356, %v1942
        %v2365 = vadd.f32 %v2357, 1e-05
        %v2366 = vadd.f32 %v2358, 1e-05
        %v2367 = vadd.f32 %v2359, 1e-05
        %v2368 = vadd.f32 %v2360, 1e-05
        %v2369 = vadd.f32 %v2361, 1e-05
        %v2370 = vadd.f32 %v2362, 1e-05
        %v2371 = vadd.f32 %v2363, 1e-05
        %v2372 = vadd.f32 %v2364, 1e-05
        %v2373 = vrsqrt.pop %v2365
        %v2374 = vmul.f32 %v2373, %v2365
        %v2375 = vmul.f32 %v2374, %v2373
        %v2376 = vmul.f32 0.5, %v2375
        %v2377 = vsub.f32 1.5, %v2376
        %v2378 = vmul.f32 %v2373, %v2377
        %vm2379 = vweird.f32 %v2365
        %vm2380 = vweird.f32 %v2373
        %vm2381 = vmor %vm2379, %vm2380
        %v2382 = vsel %vm2381, %v2373, %v2378
        %v2383 = vrsqrt.pop %v2366
        %v2384 = vmul.f32 %v2383, %v2366
        %v2385 = vmul.f32 %v2384, %v2383
        %v2386 = vmul.f32 0.5, %v2385
        %v2387 = vsub.f32 1.5, %v2386
        %v2388 = vmul.f32 %v2383, %v2387
        %vm2389 = vweird.f32 %v2366
        %vm2390 = vweird.f32 %v2383
        %vm2391 = vmor %vm2389, %vm2390
        %v2392 = vsel %vm2391, %v2383, %v2388
        %v2393 = vrsqrt.pop %v2367
        %v2394 = vmul.f32 %v2393, %v2367
        %v2395 = vmul.f32 %v2394, %v2393
        %v2396 = vmul.f32 0.5, %v2395
        %v2397 = vsub.f32 1.5, %v2396
        %v2398 = vmul.f32 %v2393, %v2397
        %vm2399 = vweird.f32 %v2367
        %vm2400 = vweird.f32 %v2393
        %vm2401 = vmor %vm2399, %vm2400
        %v2402 = vsel %vm2401, %v2393, %v2398
        %v2403 = vrsqrt.pop %v2368
        %v2404 = vmul.f32 %v2403, %v2368
        %v2405 = vmul.f32 %v2404, %v2403
        %v2406 = vmul.f32 0.5, %v2405
        %v2407 = vsub.f32 1.5, %v2406
        %v2408 = vmul.f32 %v2403, %v2407
        %vm2409 = vweird.f32 %v2368
        %vm2410 = vweird.f32 %v2403
        %vm2411 = vmor %vm2409, %vm2410
        %v2412 = vsel %vm2411, %v2403, %v2408
        %v2413 = vrsqrt.pop %v2369
        %v2414 = vmul.f32 %v2413, %v2369
        %v2415 = vmul.f32 %v2414, %v2413
        %v2416 = vmul.f32 0.5, %v2415
        %v2417 = vsub.f32 1.5, %v2416
        %v2418 = vmul.f32 %v2413, %v2417
        %vm2419 = vweird.f32 %v2369
        %vm2420 = vweird.f32 %v2413
        %vm2421 = vmor %vm2419, %vm2420
        %v2422 = vsel %vm2421, %v2413, %v2418
        %v2423 = vrsqrt.pop %v2370
        %v2424 = vmul.f32 %v2423, %v2370
        %v2425 = vmul.f32 %v2424, %v2423
        %v2426 = vmul.f32 0.5, %v2425
        %v2427 = vsub.f32 1.5, %v2426
        %v2428 = vmul.f32 %v2423, %v2427
        %vm2429 = vweird.f32 %v2370
        %vm2430 = vweird.f32 %v2423
        %vm2431 = vmor %vm2429, %vm2430
        %v2432 = vsel %vm2431, %v2423, %v2428
        %v2433 = vrsqrt.pop %v2371
        %v2434 = vmul.f32 %v2433, %v2371
        %v2435 = vmul.f32 %v2434, %v2433
        %v2436 = vmul.f32 0.5, %v2435
        %v2437 = vsub.f32 1.5, %v2436
        %v2438 = vmul.f32 %v2433, %v2437
        %vm2439 = vweird.f32 %v2371
        %vm2440 = vweird.f32 %v2433
        %vm2441 = vmor %vm2439, %vm2440
        %v2442 = vsel %vm2441, %v2433, %v2438
        %v2443 = vrsqrt.pop %v2372
        %v2444 = vmul.f32 %v2443, %v2372
        %v2445 = vmul.f32 %v2444, %v2443
        %v2446 = vmul.f32 0.5, %v2445
        %v2447 = vsub.f32 1.5, %v2446
        %v2448 = vmul.f32 %v2443, %v2447
        %vm2449 = vweird.f32 %v2372
        %vm2450 = vweird.f32 %v2443
        %vm2451 = vmor %vm2449, %vm2450
        %v2452 = vsel %vm2451, %v2443, %v2448
        %v2453 = vmul.f32 %v2317, %v2382
        %v2454 = vmul.f32 %v2318, %v2392
        %v2455 = vmul.f32 %v2319, %v2402
        %v2456 = vmul.f32 %v2320, %v2412
        %v2457 = vmul.f32 %v2321, %v2422
        %v2458 = vmul.f32 %v2322, %v2432
        %v2459 = vmul.f32 %v2323, %v2442
        %v2460 = vmul.f32 %v2324, %v2452
        %v2461 = vperm.slane %v370, 0
        %v2462 = vmul.f32 %v2453, %v2461
        %v2463 = vmul.f32 %v2454, %v2461
        %v2464 = vmul.f32 %v2455, %v2461
        %v2465 = vmul.f32 %v2456, %v2461
        %v2466 = vmul.f32 %v2457, %v2461
        %v2467 = vmul.f32 %v2458, %v2461
        %v2468 = vmul.f32 %v2459, %v2461
        %v2469 = vmul.f32 %v2460, %v2461
        %v2470 = vperm.slane %v371, 0
        %v2471 = vadd.f32 %v2462, %v2470
        %v2472 = vadd.f32 %v2463, %v2470
        %v2473 = vadd.f32 %v2464, %v2470
        %v2474 = vadd.f32 %v2465, %v2470
        %v2475 = vadd.f32 %v2466, %v2470
        %v2476 = vadd.f32 %v2467, %v2470
        %v2477 = vadd.f32 %v2468, %v2470
        %v2478 = vadd.f32 %v2469, %v2470
        %2479 = vst.msk [vmem:[%s353] sm:$0xff] %vm424, %v2471
        %2480 = vst.msk [vmem:[%s353 + $0x8] sm:$0xff] %vm424, %v2472
        %2481 = vst.msk [vmem:[%s353 + $0x10] sm:$0xff] %vm424, %v2473
        %2482 = vst.msk [vmem:[%s353 + $0x18] sm:$0xff] %vm424, %v2474
        %2483 = vst.msk [vmem:[%s353 + $0x20] sm:$0xff] %vm424, %v2475
        %2484 = vst.msk [vmem:[%s353 + $0x28] sm:$0xff] %vm424, %v2476
        %2485 = vst.msk [vmem:[%s353 + $0x30] sm:$0xff] %vm424, %v2477
        %2486 = vst.msk [vmem:[%s353 + $0x38] sm:$0xff] %vm424, %v2478
        %s2487 = sand.u32 %s165, 1
        %s2488 = scalar_lea.sflag [#allocation4], %s2487
        %s2489 = sand.u32 %s165, 1
        %s2490 = smul.addr %s2489, 64
        %s2491 = scalar_lea.vmem [#allocation13], %s2490
        // Predicated region
        $region69: #{tpu_custom_call.1} parent=43 // pred_check
          %p2492 = pneg %p175
        $region70: #{tpu_custom_call.1} parent=43 // pred_check_branch
          %2494 = sbr.rel (%p2492) target = $region72
        $region71: #{tpu_custom_call.1} parent=43 // pred_region
          %s2495 = smul.u32 4, %s26
          %2497 = vsyncadd %s2488, 0
          %s2498 = smul.addr %s2495, 2
          %s2499 = smul.addr %s2498, 8
          %s2500 = scalar_lea.hbm %s6, %s2499
          %s2501 = sshll.u32 %s2491, 4
          %s2502 = int_to_ptr.vmem [resolvable:$true] %s2501
          %s2503 = sshll.u32 %s2500, 4
          %s2504 = int_to_ptr.hbm [resolvable:$true] %s2503
          %2509 = dma.vmem_to_hbm [thread:$0]  %s2502, 1024, %s2504, %s2488, 128, 128, 8
        $region72: #{tpu_custom_call.1} parent=43 // pred_fallthru
          _
      $region44: #{tpu_custom_call.1} parent=5 // pred_fallthru
        _
      %p2510 = scmp.le.s32.totalorder 2, %s21
      // Predicated region
      $region73: #{tpu_custom_call.1} parent=5 // pred_check
        %p2511 = pneg %p2510
      $region74: #{tpu_custom_call.1} parent=5 // pred_check_branch
        %2513 = sbr.rel (%p2511) target = $region76
      $region75: #{tpu_custom_call.1} parent=5 // pred_region
        %s2514 = ssub.s32 %s21, 2
        // Predicated region
        $region77: #{tpu_custom_call.1} parent=75 // pred_check
          %p2515 = pneg %p181
        $region78: #{tpu_custom_call.1} parent=75 // pred_check_branch
          %2517 = sbr.rel (%p2515) target = $region80
        $region79: #{tpu_custom_call.1} parent=75 // pred_region
          %s2518 = sand.u32 %s166, 1
          %s2519 = scalar_lea.sflag [#allocation4], %s2518
          %s2520 = sand.u32 %s166, 1
          %s2521 = smul.addr %s2520, 64
          %s2522 = scalar_lea.vmem [#allocation13], %s2521
          %2524 = dma.done %s2519, 1024
        $region80: #{tpu_custom_call.1} parent=75 // pred_fallthru
          _
      $region76: #{tpu_custom_call.1} parent=5 // pred_fallthru
        _
    $region6: #{tpu_custom_call.1} parent=1 // loop_footer
      %s25 = sadd.s32 1, %s21
    $region7: #{tpu_custom_call.1} parent=1 // loop_footer_branch
      %20 = sbr.rel target = $region3
    $region8: #{tpu_custom_call.1} parent=1 // loop_exit
      _
    %2525 = vsyncpa [#allocation3], 1
    %s2526 = scalar_lea.sflag [#allocation3], 1
    %2527 = vsyncpa %s2526, 1
    %2528 = vsyncpa [#allocation6], 1
    %2529 = vsyncpa [#allocation9], 1
    %2530 = vsyncpa [#allocation12], 1
    %2531 = vsyncpa [#allocation4], 1
    %s2532 = scalar_lea.sflag [#allocation4], 1
    %2533 = vsyncpa %s2532, 1

</llo_original>
